<compile_context>
chip_gen: v7x
topology: tpu7x:2x2x1
jax: 0.10.0
libtpu: 0.0.40
codegen_flags: <defaults>
</compile_context>

<pallas_src>
import jax
import jax.numpy as jnp
from jax.experimental import pallas as pl
from jax.experimental.pallas import tpu as pltpu


def _leaky_relu(h, slope=0.2):
    return jnp.where(h > 0, h, slope * h)


def _round_up(n, m):
    return ((n + m - 1) // m) * m


def discriminator_kernel(x_ref,
                         w1_ref, b1_ref,
                         w2_ref, b2_ref,
                         w3_ref, b3_ref,
                         w4r_ref, b4_ref,
                         o_ref):
    # x_ref : (tb, D_in) f32
    # w*_ref: (in, out) f32; layer-4 weight is passed as a (1, 128) row.
    # b*_ref: (1, out) f32; b4 is (1, 1).
    # o_ref : (1, tb//128, 128) f32 -- lane-packed sigmoid outputs.
    n_chunks = o_ref.shape[1]  # tb // 128, static -> unrolled Python loop.

    for r in range(n_chunks):
        xc = x_ref[pl.ds(r * 128, 128), :]                     # (128, D_in)

        # Layer 1: Linear(D_in, 128) + LeakyReLU (+ Dropout == identity, eval)
        h = jnp.dot(xc, w1_ref[...], preferred_element_type=jnp.float32)
        h = _leaky_relu(h + b1_ref[...])

        # Layer 2: Linear(128, 256) + LeakyReLU
        h = jnp.dot(h, w2_ref[...], preferred_element_type=jnp.float32)
        h = _leaky_relu(h + b2_ref[...])

        # Layer 3: Linear(256, 128) + LeakyReLU (+ Dropout == identity, eval)
        h = jnp.dot(h, w3_ref[...], preferred_element_type=jnp.float32)
        h = _leaky_relu(h + b3_ref[...])                       # (128, 128)

        # Layer 4: Linear(128, 1) + Sigmoid, with the batch index placed on
        # lanes:  row[0, m] = sum_k w4[k] * h[m, k]  -> lane-dense (1, 128).
        row = jnp.dot(w4r_ref[...], h.T, preferred_element_type=jnp.float32)
        o_ref[0, pl.ds(r, 1), :] = jax.nn.sigmoid(row + b4_ref[...])


def discriminator_forward(x, params, *, tb=None):
    """x: (B, D_in) f32. params: f32 (in,out) weights and (1,out) biases."""
    B, D_in = x.shape
    x = x.astype(jnp.float32)

    # Only batch-row padding (to a multiple of 128) may copy; no feature-dim
    # pad and no dtype cast in the wrapper.
    B_pad = _round_up(B, 128)
    if B_pad != B:
        x = jnp.pad(x, ((0, B_pad - B), (0, 0)))

    # Batch tile heuristic:
    #   * single tile for B <= 128
    #   * otherwise >= 2 tiles (v7x megacore can split the "parallel" axis)
    #     of up to 1024 rows (amortizes ~0.35us/step overhead on v5e/v6e).
    if tb is None:
        if B_pad <= 128:
            tb = B_pad
        else:
            tb = max(128, min(1024, (B_pad // 2 // 128) * 128))
            while B_pad % tb:
                tb -= 128
    assert tb % 128 == 0 and B_pad % tb == 0

    n_tiles = B_pad // tb
    n_chunks = tb // 128

    w1, b1 = params["w1"], params["b1"]
    w2, b2 = params["w2"], params["b2"]
    w3, b3 = params["w3"], params["b3"]
    w4, b4 = params["w4"], params["b4"]
    w4r = w4.reshape(1, w4.shape[0])        # (128,1) -> (1,128) row

    def rep(a):
        # whole-array block, replicated across the batch grid axis
        return pl.BlockSpec(a.shape, lambda i, _nd=a.ndim: (0,) * _nd)

    flops = 2 * B_pad * (D_in * 128 + 128 * 256 + 256 * 128 + 128 * 1)
    bytes_accessed = (B_pad * D_in * 4 + B_pad * 4
                      + sum(int(p.size) for p in params.values()) * 4)
    cost = pl.CostEstimate(flops=flops, transcendentals=B_pad,
                           bytes_accessed=bytes_accessed)

    out = pl.pallas_call(
        discriminator_kernel,
        out_shape=jax.ShapeDtypeStruct((n_tiles, n_chunks, 128), jnp.float32),
        grid=(n_tiles,),
        in_specs=[
            pl.BlockSpec((tb, D_in), lambda i: (i, 0)),   # x tile, unpadded K
            rep(w1), rep(b1),
            rep(w2), rep(b2),
            rep(w3), rep(b3),
            rep(w4r), rep(b4),
        ],
        out_specs=pl.BlockSpec((1, n_chunks, 128), lambda i: (i, 0, 0)),
        compiler_params=pltpu.CompilerParams(
            dimension_semantics=("parallel",)),
        cost_estimate=cost,
    )(x, w1, b1, w2, b2, w3, b3, w4r, b4)

    # (n_tiles, tb//128, 128) flattens row-major to exactly the batch order.
    return out.reshape(B_pad, 1)[:B]


def init_params(key, input_size):
    """Deterministic init mimicking nn.Linear default U(-1/sqrt(in), 1/sqrt(in)).
    Weights stored as (in, out); biases as (1, out). All f32."""
    dims = [(input_size, 128), (128, 256), (256, 128), (128, 1)]
    params = {}
    for idx, (fan_in, fan_out) in enumerate(dims, start=1):
        key, kw, kb = jax.random.split(key, 3)
        bound = 1.0 / float(fan_in) ** 0.5
        params[f"w{idx}"] = jax.random.uniform(
            kw, (fan_in, fan_out), jnp.float32, -bound, bound)
        params[f"b{idx}"] = jax.random.uniform(
            kb, (1, fan_out), jnp.float32, -bound, bound)
    return params


def reference_forward(x, params):
    hp = jax.lax.Precision.HIGHEST
    h = jnp.dot(x, params["w1"], precision=hp) + params["b1"]
    h = jnp.where(h > 0, h, 0.2 * h)
    h = jnp.dot(h, params["w2"], precision=hp) + params["b2"]
    h = jnp.where(h > 0, h, 0.2 * h)
    h = jnp.dot(h, params["w3"], precision=hp) + params["b3"]
    h = jnp.where(h > 0, h, 0.2 * h)
    h = jnp.dot(h, params["w4"], precision=hp) + params["b4"]
    return jax.nn.sigmoid(h)


if __name__ == "__main__":
    key = jax.random.PRNGKey(0)
    k_params, k_x = jax.random.split(key)

    batch = 512          # -> two 256-row "parallel" batch tiles, 2 chunks each
    input_size = 64      # e.g. max_length=8 * vocab_size=8

    params = init_params(k_params, input_size)
    x = jax.random.normal(k_x, (batch, input_size), jnp.float32)

    out = jax.block_until_ready(discriminator_forward(x, params))
    ref = reference_forward(x, params)

    assert out.shape == (batch, 1)
    # f32 MXU matmuls vs HIGHEST-precision XLA reference on a [0,1] output.
    assert jnp.allclose(out, ref, atol=5e-3, rtol=0.0), \
        float(jnp.max(jnp.abs(out - ref)))

    print("KERNEL_OK")
</pallas_src>

<mosaic_0001>
module attributes {stable_mosaic.version = 11 : i64} {
  func.func @discriminator_kernel(%arg0: i32, %arg1: memref<256x64xf32, #tpu.memory_space<vmem>>, %arg2: memref<64x128xf32, #tpu.memory_space<vmem>>, %arg3: memref<1x128xf32, #tpu.memory_space<vmem>>, %arg4: memref<128x256xf32, #tpu.memory_space<vmem>>, %arg5: memref<1x256xf32, #tpu.memory_space<vmem>>, %arg6: memref<256x128xf32, #tpu.memory_space<vmem>>, %arg7: memref<1x128xf32, #tpu.memory_space<vmem>>, %arg8: memref<1x128xf32, #tpu.memory_space<vmem>>, %arg9: memref<1x1xf32, #tpu.memory_space<vmem>>, %arg10: memref<1x2x128xf32, #tpu.memory_space<vmem>>) attributes {dimension_semantics = [#tpu.dimension_semantics<parallel>], iteration_bounds = array<i64: 2>, scalar_prefetch = 0 : i64, scratch_operands = 0 : i64, tpu.core_type = #tpu.core_type<tc>, window_params = [{transform_indices = @transform_0, window_bounds = array<i64: 256, 64>}, {pipeline_mode = #tpu.pipeline_mode<synchronous>, transform_indices = @transform_1, window_bounds = array<i64: 64, 128>}, {pipeline_mode = #tpu.pipeline_mode<synchronous>, transform_indices = @transform_2, window_bounds = array<i64: 1, 128>}, {pipeline_mode = #tpu.pipeline_mode<synchronous>, transform_indices = @transform_3, window_bounds = array<i64: 128, 256>}, {pipeline_mode = #tpu.pipeline_mode<synchronous>, transform_indices = @transform_4, window_bounds = array<i64: 1, 256>}, {pipeline_mode = #tpu.pipeline_mode<synchronous>, transform_indices = @transform_5, window_bounds = array<i64: 256, 128>}, {pipeline_mode = #tpu.pipeline_mode<synchronous>, transform_indices = @transform_6, window_bounds = array<i64: 1, 128>}, {pipeline_mode = #tpu.pipeline_mode<synchronous>, transform_indices = @transform_7, window_bounds = array<i64: 1, 128>}, {pipeline_mode = #tpu.pipeline_mode<synchronous>, transform_indices = @transform_8, window_bounds = array<i64: 1, 1>}, {transform_indices = @transform_9, window_bounds = array<i64: 1, 2, 128>}]} {
    %c0 = arith.constant 0 : index
    %c0_0 = arith.constant 0 : index
    %0 = vector.load %arg1[%c0, %c0_0] : memref<256x64xf32, #tpu.memory_space<vmem>>, vector<128x64xf32>
    %c0_1 = arith.constant 0 : index
    %c0_2 = arith.constant 0 : index
    %1 = vector.load %arg2[%c0_1, %c0_2] : memref<64x128xf32, #tpu.memory_space<vmem>>, vector<64x128xf32>
    %cst = arith.constant dense<0.000000e+00> : vector<128x128xf32>
    %2 = tpu.matmul %0, %1, %cst {dimension_numbers = #tpu.dot_dimension_numbers<[1], [0], [0], [1], [0, 0, 1, 1], [], []>} : vector<128x64xf32>, vector<64x128xf32>, vector<128x128xf32> -> vector<128x128xf32>
    %c0_3 = arith.constant 0 : index
    %c0_4 = arith.constant 0 : index
    %3 = vector.load %arg3[%c0_3, %c0_4] : memref<1x128xf32, #tpu.memory_space<vmem>>, vector<1x128xf32>
    %4 = vector.broadcast %3 : vector<1x128xf32> to vector<128x128xf32>
    %5 = arith.addf %2, %4 : vector<128x128xf32>
    %cst_5 = arith.constant 0.000000e+00 : f32
    %6 = vector.broadcast %cst_5 : f32 to vector<128x128xf32>
    %7 = arith.cmpf ogt, %5, %6 : vector<128x128xf32>
    %cst_6 = arith.constant 2.000000e-01 : f32
    %8 = vector.broadcast %cst_6 : f32 to vector<128x128xf32>
    %9 = arith.mulf %8, %5 : vector<128x128xf32>
    %10 = arith.select %7, %5, %9 : vector<128x128xi1>, vector<128x128xf32>
    %c0_7 = arith.constant 0 : index
    %c0_8 = arith.constant 0 : index
    %11 = vector.load %arg4[%c0_7, %c0_8] : memref<128x256xf32, #tpu.memory_space<vmem>>, vector<128x256xf32>
    %cst_9 = arith.constant dense<0.000000e+00> : vector<128x256xf32>
    %12 = tpu.matmul %10, %11, %cst_9 {dimension_numbers = #tpu.dot_dimension_numbers<[1], [0], [0], [1], [0, 0, 1, 1], [], []>} : vector<128x128xf32>, vector<128x256xf32>, vector<128x256xf32> -> vector<128x256xf32>
    %c0_10 = arith.constant 0 : index
    %c0_11 = arith.constant 0 : index
    %13 = vector.load %arg5[%c0_10, %c0_11] : memref<1x256xf32, #tpu.memory_space<vmem>>, vector<1x256xf32>
    %14 = vector.broadcast %13 : vector<1x256xf32> to vector<128x256xf32>
    %15 = arith.addf %12, %14 : vector<128x256xf32>
    %cst_12 = arith.constant 0.000000e+00 : f32
    %16 = vector.broadcast %cst_12 : f32 to vector<128x256xf32>
    %17 = arith.cmpf ogt, %15, %16 : vector<128x256xf32>
    %cst_13 = arith.constant 2.000000e-01 : f32
    %18 = vector.broadcast %cst_13 : f32 to vector<128x256xf32>
    %19 = arith.mulf %18, %15 : vector<128x256xf32>
    %20 = arith.select %17, %15, %19 : vector<128x256xi1>, vector<128x256xf32>
    %c0_14 = arith.constant 0 : index
    %c0_15 = arith.constant 0 : index
    %21 = vector.load %arg6[%c0_14, %c0_15] : memref<256x128xf32, #tpu.memory_space<vmem>>, vector<256x128xf32>
    %cst_16 = arith.constant dense<0.000000e+00> : vector<128x128xf32>
    %22 = tpu.matmul %20, %21, %cst_16 {dimension_numbers = #tpu.dot_dimension_numbers<[1], [0], [0], [1], [0, 0, 1, 1], [], []>} : vector<128x256xf32>, vector<256x128xf32>, vector<128x128xf32> -> vector<128x128xf32>
    %c0_17 = arith.constant 0 : index
    %c0_18 = arith.constant 0 : index
    %23 = vector.load %arg7[%c0_17, %c0_18] : memref<1x128xf32, #tpu.memory_space<vmem>>, vector<1x128xf32>
    %24 = vector.broadcast %23 : vector<1x128xf32> to vector<128x128xf32>
    %25 = arith.addf %22, %24 : vector<128x128xf32>
    %cst_19 = arith.constant 0.000000e+00 : f32
    %26 = vector.broadcast %cst_19 : f32 to vector<128x128xf32>
    %27 = arith.cmpf ogt, %25, %26 : vector<128x128xf32>
    %cst_20 = arith.constant 2.000000e-01 : f32
    %28 = vector.broadcast %cst_20 : f32 to vector<128x128xf32>
    %29 = arith.mulf %28, %25 : vector<128x128xf32>
    %30 = arith.select %27, %25, %29 : vector<128x128xi1>, vector<128x128xf32>
    %c0_21 = arith.constant 0 : index
    %c0_22 = arith.constant 0 : index
    %31 = vector.load %arg8[%c0_21, %c0_22] : memref<1x128xf32, #tpu.memory_space<vmem>>, vector<1x128xf32>
    %32 = tpu.transpose %30, [1, 0] : vector<128x128xf32> -> vector<128x128xf32>
    %cst_23 = arith.constant dense<0.000000e+00> : vector<1x128xf32>
    %33 = tpu.matmul %31, %32, %cst_23 {dimension_numbers = #tpu.dot_dimension_numbers<[1], [0], [0], [1], [0, 0, 1, 1], [], []>} : vector<1x128xf32>, vector<128x128xf32>, vector<1x128xf32> -> vector<1x128xf32>
    %c0_24 = arith.constant 0 : index
    %c0_25 = arith.constant 0 : index
    %34 = vector.load %arg9[%c0_24, %c0_25] : memref<1x1xf32, #tpu.memory_space<vmem>>, vector<1x1xf32>
    %35 = vector.broadcast %34 : vector<1x1xf32> to vector<1x128xf32>
    %36 = arith.addf %33, %35 : vector<1x128xf32>
    %37 = arith.negf %36 : vector<1x128xf32>
    %38 = math.exp %37 : vector<1x128xf32>
    %cst_26 = arith.constant 1.000000e+00 : f32
    %39 = vector.broadcast %cst_26 : f32 to vector<1x128xf32>
    %40 = arith.addf %39, %38 : vector<1x128xf32>
    %41 = arith.divf %39, %40 : vector<1x128xf32>
    %c0_27 = arith.constant 0 : index
    %c0_28 = arith.constant 0 : index
    %c0_29 = arith.constant 0 : index
    %42 = vector.load %arg10[%c0_27, %c0_28, %c0_29] : memref<1x2x128xf32, #tpu.memory_space<vmem>>, vector<1x1x128xf32>
    %43 = vector.shape_cast %42 : vector<1x1x128xf32> to vector<1x128xf32>
    %44 = vector.shape_cast %41 : vector<1x128xf32> to vector<1x1x128xf32>
    tpu.vector_store %arg10[%c0_27, %c0_28, %c0_29], %44 {strides = array<i32>} : memref<1x2x128xf32, #tpu.memory_space<vmem>>, vector<1x1x128xf32>,
    %c128 = arith.constant 128 : index
    %c0_30 = arith.constant 0 : index
    %45 = vector.load %arg1[%c128, %c0_30] : memref<256x64xf32, #tpu.memory_space<vmem>>, vector<128x64xf32>
    %c0_31 = arith.constant 0 : index
    %c0_32 = arith.constant 0 : index
    %46 = vector.load %arg2[%c0_31, %c0_32] : memref<64x128xf32, #tpu.memory_space<vmem>>, vector<64x128xf32>
    %cst_33 = arith.constant dense<0.000000e+00> : vector<128x128xf32>
    %47 = tpu.matmul %45, %46, %cst_33 {dimension_numbers = #tpu.dot_dimension_numbers<[1], [0], [0], [1], [0, 0, 1, 1], [], []>} : vector<128x64xf32>, vector<64x128xf32>, vector<128x128xf32> -> vector<128x128xf32>
    %c0_34 = arith.constant 0 : index
    %c0_35 = arith.constant 0 : index
    %48 = vector.load %arg3[%c0_34, %c0_35] : memref<1x128xf32, #tpu.memory_space<vmem>>, vector<1x128xf32>
    %49 = vector.broadcast %48 : vector<1x128xf32> to vector<128x128xf32>
    %50 = arith.addf %47, %49 : vector<128x128xf32>
    %cst_36 = arith.constant 0.000000e+00 : f32
    %51 = vector.broadcast %cst_36 : f32 to vector<128x128xf32>
    %52 = arith.cmpf ogt, %50, %51 : vector<128x128xf32>
    %cst_37 = arith.constant 2.000000e-01 : f32
    %53 = vector.broadcast %cst_37 : f32 to vector<128x128xf32>
    %54 = arith.mulf %53, %50 : vector<128x128xf32>
    %55 = arith.select %52, %50, %54 : vector<128x128xi1>, vector<128x128xf32>
    %c0_38 = arith.constant 0 : index
    %c0_39 = arith.constant 0 : index
    %56 = vector.load %arg4[%c0_38, %c0_39] : memref<128x256xf32, #tpu.memory_space<vmem>>, vector<128x256xf32>
    %cst_40 = arith.constant dense<0.000000e+00> : vector<128x256xf32>
    %57 = tpu.matmul %55, %56, %cst_40 {dimension_numbers = #tpu.dot_dimension_numbers<[1], [0], [0], [1], [0, 0, 1, 1], [], []>} : vector<128x128xf32>, vector<128x256xf32>, vector<128x256xf32> -> vector<128x256xf32>
    %c0_41 = arith.constant 0 : index
    %c0_42 = arith.constant 0 : index
    %58 = vector.load %arg5[%c0_41, %c0_42] : memref<1x256xf32, #tpu.memory_space<vmem>>, vector<1x256xf32>
    %59 = vector.broadcast %58 : vector<1x256xf32> to vector<128x256xf32>
    %60 = arith.addf %57, %59 : vector<128x256xf32>
    %cst_43 = arith.constant 0.000000e+00 : f32
    %61 = vector.broadcast %cst_43 : f32 to vector<128x256xf32>
    %62 = arith.cmpf ogt, %60, %61 : vector<128x256xf32>
    %cst_44 = arith.constant 2.000000e-01 : f32
    %63 = vector.broadcast %cst_44 : f32 to vector<128x256xf32>
    %64 = arith.mulf %63, %60 : vector<128x256xf32>
    %65 = arith.select %62, %60, %64 : vector<128x256xi1>, vector<128x256xf32>
    %c0_45 = arith.constant 0 : index
    %c0_46 = arith.constant 0 : index
    %66 = vector.load %arg6[%c0_45, %c0_46] : memref<256x128xf32, #tpu.memory_space<vmem>>, vector<256x128xf32>
    %cst_47 = arith.constant dense<0.000000e+00> : vector<128x128xf32>
    %67 = tpu.matmul %65, %66, %cst_47 {dimension_numbers = #tpu.dot_dimension_numbers<[1], [0], [0], [1], [0, 0, 1, 1], [], []>} : vector<128x256xf32>, vector<256x128xf32>, vector<128x128xf32> -> vector<128x128xf32>
    %c0_48 = arith.constant 0 : index
    %c0_49 = arith.constant 0 : index
    %68 = vector.load %arg7[%c0_48, %c0_49] : memref<1x128xf32, #tpu.memory_space<vmem>>, vector<1x128xf32>
    %69 = vector.broadcast %68 : vector<1x128xf32> to vector<128x128xf32>
    %70 = arith.addf %67, %69 : vector<128x128xf32>
    %cst_50 = arith.constant 0.000000e+00 : f32
    %71 = vector.broadcast %cst_50 : f32 to vector<128x128xf32>
    %72 = arith.cmpf ogt, %70, %71 : vector<128x128xf32>
    %cst_51 = arith.constant 2.000000e-01 : f32
    %73 = vector.broadcast %cst_51 : f32 to vector<128x128xf32>
    %74 = arith.mulf %73, %70 : vector<128x128xf32>
    %75 = arith.select %72, %70, %74 : vector<128x128xi1>, vector<128x128xf32>
    %c0_52 = arith.constant 0 : index
    %c0_53 = arith.constant 0 : index
    %76 = vector.load %arg8[%c0_52, %c0_53] : memref<1x128xf32, #tpu.memory_space<vmem>>, vector<1x128xf32>
    %77 = tpu.transpose %75, [1, 0] : vector<128x128xf32> -> vector<128x128xf32>
    %cst_54 = arith.constant dense<0.000000e+00> : vector<1x128xf32>
    %78 = tpu.matmul %76, %77, %cst_54 {dimension_numbers = #tpu.dot_dimension_numbers<[1], [0], [0], [1], [0, 0, 1, 1], [], []>} : vector<1x128xf32>, vector<128x128xf32>, vector<1x128xf32> -> vector<1x128xf32>
    %c0_55 = arith.constant 0 : index
    %c0_56 = arith.constant 0 : index
    %79 = vector.load %arg9[%c0_55, %c0_56] : memref<1x1xf32, #tpu.memory_space<vmem>>, vector<1x1xf32>
    %80 = vector.broadcast %79 : vector<1x1xf32> to vector<1x128xf32>
    %81 = arith.addf %78, %80 : vector<1x128xf32>
    %82 = arith.negf %81 : vector<1x128xf32>
    %83 = math.exp %82 : vector<1x128xf32>
    %cst_57 = arith.constant 1.000000e+00 : f32
    %84 = vector.broadcast %cst_57 : f32 to vector<1x128xf32>
    %85 = arith.addf %84, %83 : vector<1x128xf32>
    %86 = arith.divf %84, %85 : vector<1x128xf32>
    %c0_58 = arith.constant 0 : index
    %c1 = arith.constant 1 : index
    %c0_59 = arith.constant 0 : index
    %87 = vector.load %arg10[%c0_58, %c1, %c0_59] : memref<1x2x128xf32, #tpu.memory_space<vmem>>, vector<1x1x128xf32>
    %88 = vector.shape_cast %87 : vector<1x1x128xf32> to vector<1x128xf32>
    %89 = vector.shape_cast %86 : vector<1x128xf32> to vector<1x1x128xf32>
    tpu.vector_store %arg10[%c0_58, %c1, %c0_59], %89 {strides = array<i32>} : memref<1x2x128xf32, #tpu.memory_space<vmem>>, vector<1x1x128xf32>,
    return
  }
  func.func @transform_0(%arg0: i32) -> (i32, i32) {
    %c0_i32 = arith.constant 0 : i32
    %c0_i32_0 = arith.constant 0 : i32
    return %arg0, %c0_i32 : i32, i32
  }
  func.func @transform_1(%arg0: i32) -> (i32, i32) {
    %c0_i32 = arith.constant 0 : i32
    %c0_i32_0 = arith.constant 0 : i32
    %c0_i32_1 = arith.constant 0 : i32
    return %c0_i32, %c0_i32_0 : i32, i32
  }
  func.func @transform_2(%arg0: i32) -> (i32, i32) {
    %c0_i32 = arith.constant 0 : i32
    %c0_i32_0 = arith.constant 0 : i32
    %c0_i32_1 = arith.constant 0 : i32
    return %c0_i32, %c0_i32_0 : i32, i32
  }
  func.func @transform_3(%arg0: i32) -> (i32, i32) {
    %c0_i32 = arith.constant 0 : i32
    %c0_i32_0 = arith.constant 0 : i32
    %c0_i32_1 = arith.constant 0 : i32
    return %c0_i32, %c0_i32_0 : i32, i32
  }
  func.func @transform_4(%arg0: i32) -> (i32, i32) {
    %c0_i32 = arith.constant 0 : i32
    %c0_i32_0 = arith.constant 0 : i32
    %c0_i32_1 = arith.constant 0 : i32
    return %c0_i32, %c0_i32_0 : i32, i32
  }
  func.func @transform_5(%arg0: i32) -> (i32, i32) {
    %c0_i32 = arith.constant 0 : i32
    %c0_i32_0 = arith.constant 0 : i32
    %c0_i32_1 = arith.constant 0 : i32
    return %c0_i32, %c0_i32_0 : i32, i32
  }
  func.func @transform_6(%arg0: i32) -> (i32, i32) {
    %c0_i32 = arith.constant 0 : i32
    %c0_i32_0 = arith.constant 0 : i32
    %c0_i32_1 = arith.constant 0 : i32
    return %c0_i32, %c0_i32_0 : i32, i32
  }
  func.func @transform_7(%arg0: i32) -> (i32, i32) {
    %c0_i32 = arith.constant 0 : i32
    %c0_i32_0 = arith.constant 0 : i32
    %c0_i32_1 = arith.constant 0 : i32
    return %c0_i32, %c0_i32_0 : i32, i32
  }
  func.func @transform_8(%arg0: i32) -> (i32, i32) {
    %c0_i32 = arith.constant 0 : i32
    %c0_i32_0 = arith.constant 0 : i32
    %c0_i32_1 = arith.constant 0 : i32
    return %c0_i32, %c0_i32_0 : i32, i32
  }
  func.func @transform_9(%arg0: i32) -> (i32, i32, i32) {
    %c0_i32 = arith.constant 0 : i32
    %c0_i32_0 = arith.constant 0 : i32
    %c0_i32_1 = arith.constant 0 : i32
    return %arg0, %c0_i32, %c0_i32_0 : i32, i32, i32
  }
}

</mosaic_0001>

<llo_original>
// kernel: tpu_custom_call.1
$region0: #{tpu_custom_call.1}
  #allocation0 [shape = 'u32[]', space=smem, size = 0x4, offset = 0x4, fixed_abs, tag = 'smem constant byte address 0x4 - core index']
  #allocation1 [shape = 'u32[144,128]{1,0:T(1,128)}', space=vmem, size = 0x12000, scoped, tag = 'internal scratch']
  #allocation2 [shape = 'f32[1,1]{1,0:T(1,128)S(1)}', space=vmem, size = 0x200, scoped, tag = 'scoped memory for tpu_custom_call.1']
  %s0 = inlined_call_operand.vmem [shape: f32[512,64], index: 0, kind: input, shape index: {}]
  %s1 = inlined_call_operand.vmem [shape: f32[64,128], index: 1, kind: input, shape index: {}]
  %s2 = inlined_call_operand.vmem [shape: f32[1,128], index: 2, kind: input, shape index: {}]
  %s3 = inlined_call_operand.vmem [shape: f32[128,256], index: 3, kind: input, shape index: {}]
  %s4 = inlined_call_operand.vmem [shape: f32[1,256], index: 4, kind: input, shape index: {}]
  %s5 = inlined_call_operand.vmem [shape: f32[256,128], index: 5, kind: input, shape index: {}]
  %s6 = inlined_call_operand.vmem [shape: f32[1,128], index: 6, kind: input, shape index: {}]
  %s7 = inlined_call_operand.vmem [shape: f32[1,128], index: 7, kind: input, shape index: {}]
  %s8 = inlined_call_operand.<no memory space> [shape: f32[1,1], index: 8, kind: input, shape index: {}]
  %s9 = inlined_call_operand.hbm [shape: f32[2,2,128], index: 9, kind: output, shape index: {}]
  %s10 = sld [smem:[#allocation0]]
  $region69: #{tpu_custom_call.1} parent=0
    _
  %s12 = ssub.s32 1, %s10
  %s13 = scalar_select 0, %s12, %s10
  %v14 = vstv %s8
  %15 = vst [vmem:[#allocation2] sm:$0x1] %v14
  $region1: #{tpu_custom_call.1} parent=0
    #allocation3 [shape = 'u8[2048]{0}', space=vmem, size = 0x800, scoped, tag = 'output window, operand 0']
    #allocation4 [shape = 's32[2]{0}', space=sflag, size = 0x8, scoped, tag = 'scoped memory for tpu_custom_call.1']
    %16 = vsyncpa [#allocation4], 0
    %s17 = scalar_lea.sflag [#allocation4], 1
    %18 = vsyncpa %s17, 0
    loop: start=0, step=1, limit=4
    $region2: #{tpu_custom_call.1} parent=1 // loop_pre_header
      _
    $region3: #{tpu_custom_call.1} parent=1 // loop_header
      %s20 = sphi 0, %s24
      %p21 = scmp.ge.s32.totalorder %s20, 4
      %s30 = sphi 0, %s32
      %s33 = sphi 0, %s30
      %s34 = sphi 0, %s33
      %s50 = sphi 0, %s34
      %s54 = sphi 0, %s54
      %s56 = sphi 0, %s54
      %s57 = sphi 0, %s56
      %s71 = sphi 0, %s57
      %s75 = sphi 0, %s75
      %s77 = sphi 0, %s75
      %s78 = sphi 0, %s77
      %s92 = sphi 0, %s78
      %s96 = sphi 0, %s96
      %s98 = sphi 0, %s96
      %s99 = sphi 0, %s98
      %s113 = sphi 0, %s99
      %s117 = sphi 0, %s117
      %s119 = sphi 0, %s117
      %s120 = sphi 0, %s119
      %s134 = sphi 0, %s120
      %s138 = sphi 0, %s138
      %s140 = sphi 0, %s138
      %s141 = sphi 0, %s140
      %s155 = sphi 0, %s141
      %s159 = sphi 0, %s159
      %s161 = sphi 0, %s159
      %s162 = sphi 0, %s161
      %s176 = sphi 0, %s162
      %s180 = sphi 0, %s180
      %s182 = sphi 0, %s180
      %s183 = sphi 0, %s182
      %s197 = sphi 0, %s183
      %s201 = sphi 0, %s201
      %s203 = sphi 0, %s201
      %s204 = sphi 0, %s203
      %s218 = sphi 0, %s204
      %s224 = sphi 0, %s226
      %s227 = sphi 0, %s224
      %s228 = sphi 0, %s227
      %s244 = sphi 0, %s228
    $region4: #{tpu_custom_call.1} parent=1 // loop_header_branch
      %23 = sbr.rel (%p21) target = $region8
    $region5: #{tpu_custom_call.1} parent=1 // loop_body
      %s25 = ssub.s32 %s20, 1
      %s26 = ssub.s32 %s20, 2
      %s27 = sadd.s32 %s20, 1
      %s28 = ssub.s32 %s20, %s27
      %p29 = scmp.eq.s32.totalorder %s28, 0
      %s31 = sadd.s32 %s30, 1
      %s32 = scalar_select %p29, %s30, %s31
      %p35 = pneg %p29
      %p36 = scmp.eq.s32.totalorder %s20, 1
      %p37 = por %p35, %p36
      %p38 = scmp.ne.s32.totalorder %s30, %s33
      %p39 = scmp.eq.s32.totalorder %s20, 0
      %p40 = por %p38, %p39
      %p41 = scmp.ne.s32.totalorder %s30, %s33
      %p42 = scmp.eq.s32.totalorder %s25, 1
      %p43 = por %p41, %p42
      %p44 = scmp.ne.s32.totalorder %s33, %s34
      %p45 = scmp.eq.s32.totalorder %s25, 0
      %p46 = por %p44, %p45
      %p47 = scmp.ne.s32.totalorder %s33, %s34
      %p48 = scmp.eq.s32.totalorder %s26, 1
      %p49 = por %p47, %p48
      %p51 = scmp.ne.s32.totalorder %s34, %s50
      %p52 = scmp.eq.s32.totalorder %s26, 0
      %p53 = por %p51, %p52
      %s55 = sadd.s32 %s54, 1
      %p58 = scmp.eq.s32.totalorder %s20, 1
      %p59 = scmp.ne.s32.totalorder %s54, %s56
      %p60 = scmp.eq.s32.totalorder %s20, 0
      %p61 = por %p59, %p60
      %p62 = scmp.ne.s32.totalorder %s54, %s56
      %p63 = scmp.eq.s32.totalorder %s25, 1
      %p64 = por %p62, %p63
      %p65 = scmp.ne.s32.totalorder %s56, %s57
      %p66 = scmp.eq.s32.totalorder %s25, 0
      %p67 = por %p65, %p66
      %p68 = scmp.ne.s32.totalorder %s56, %s57
      %p69 = scmp.eq.s32.totalorder %s26, 1
      %p70 = por %p68, %p69
      %p72 = scmp.ne.s32.totalorder %s57, %s71
      %p73 = scmp.eq.s32.totalorder %s26, 0
      %p74 = por %p72, %p73
      %s76 = sadd.s32 %s75, 1
      %p79 = scmp.eq.s32.totalorder %s20, 1
      %p80 = scmp.ne.s32.totalorder %s75, %s77
      %p81 = scmp.eq.s32.totalorder %s20, 0
      %p82 = por %p80, %p81
      %p83 = scmp.ne.s32.totalorder %s75, %s77
      %p84 = scmp.eq.s32.totalorder %s25, 1
      %p85 = por %p83, %p84
      %p86 = scmp.ne.s32.totalorder %s77, %s78
      %p87 = scmp.eq.s32.totalorder %s25, 0
      %p88 = por %p86, %p87
      %p89 = scmp.ne.s32.totalorder %s77, %s78
      %p90 = scmp.eq.s32.totalorder %s26, 1
      %p91 = por %p89, %p90
      %p93 = scmp.ne.s32.totalorder %s78, %s92
      %p94 = scmp.eq.s32.totalorder %s26, 0
      %p95 = por %p93, %p94
      %s97 = sadd.s32 %s96, 1
      %p100 = scmp.eq.s32.totalorder %s20, 1
      %p101 = scmp.ne.s32.totalorder %s96, %s98
      %p102 = scmp.eq.s32.totalorder %s20, 0
      %p103 = por %p101, %p102
      %p104 = scmp.ne.s32.totalorder %s96, %s98
      %p105 = scmp.eq.s32.totalorder %s25, 1
      %p106 = por %p104, %p105
      %p107 = scmp.ne.s32.totalorder %s98, %s99
      %p108 = scmp.eq.s32.totalorder %s25, 0
      %p109 = por %p107, %p108
      %p110 = scmp.ne.s32.totalorder %s98, %s99
      %p111 = scmp.eq.s32.totalorder %s26, 1
      %p112 = por %p110, %p111
      %p114 = scmp.ne.s32.totalorder %s99, %s113
      %p115 = scmp.eq.s32.totalorder %s26, 0
      %p116 = por %p114, %p115
      %s118 = sadd.s32 %s117, 1
      %p121 = scmp.eq.s32.totalorder %s20, 1
      %p122 = scmp.ne.s32.totalorder %s117, %s119
      %p123 = scmp.eq.s32.totalorder %s20, 0
      %p124 = por %p122, %p123
      %p125 = scmp.ne.s32.totalorder %s117, %s119
      %p126 = scmp.eq.s32.totalorder %s25, 1
      %p127 = por %p125, %p126
      %p128 = scmp.ne.s32.totalorder %s119, %s120
      %p129 = scmp.eq.s32.totalorder %s25, 0
      %p130 = por %p128, %p129
      %p131 = scmp.ne.s32.totalorder %s119, %s120
      %p132 = scmp.eq.s32.totalorder %s26, 1
      %p133 = por %p131, %p132
      %p135 = scmp.ne.s32.totalorder %s120, %s134
      %p136 = scmp.eq.s32.totalorder %s26, 0
      %p137 = por %p135, %p136
      %s139 = sadd.s32 %s138, 1
      %p142 = scmp.eq.s32.totalorder %s20, 1
      %p143 = scmp.ne.s32.totalorder %s138, %s140
      %p144 = scmp.eq.s32.totalorder %s20, 0
      %p145 = por %p143, %p144
      %p146 = scmp.ne.s32.totalorder %s138, %s140
      %p147 = scmp.eq.s32.totalorder %s25, 1
      %p148 = por %p146, %p147
      %p149 = scmp.ne.s32.totalorder %s140, %s141
      %p150 = scmp.eq.s32.totalorder %s25, 0
      %p151 = por %p149, %p150
      %p152 = scmp.ne.s32.totalorder %s140, %s141
      %p153 = scmp.eq.s32.totalorder %s26, 1
      %p154 = por %p152, %p153
      %p156 = scmp.ne.s32.totalorder %s141, %s155
      %p157 = scmp.eq.s32.totalorder %s26, 0
      %p158 = por %p156, %p157
      %s160 = sadd.s32 %s159, 1
      %p163 = scmp.eq.s32.totalorder %s20, 1
      %p164 = scmp.ne.s32.totalorder %s159, %s161
      %p165 = scmp.eq.s32.totalorder %s20, 0
      %p166 = por %p164, %p165
      %p167 = scmp.ne.s32.totalorder %s159, %s161
      %p168 = scmp.eq.s32.totalorder %s25, 1
      %p169 = por %p167, %p168
      %p170 = scmp.ne.s32.totalorder %s161, %s162
      %p171 = scmp.eq.s32.totalorder %s25, 0
      %p172 = por %p170, %p171
      %p173 = scmp.ne.s32.totalorder %s161, %s162
      %p174 = scmp.eq.s32.totalorder %s26, 1
      %p175 = por %p173, %p174
      %p177 = scmp.ne.s32.totalorder %s162, %s176
      %p178 = scmp.eq.s32.totalorder %s26, 0
      %p179 = por %p177, %p178
      %s181 = sadd.s32 %s180, 1
      %p184 = scmp.eq.s32.totalorder %s20, 1
      %p185 = scmp.ne.s32.totalorder %s180, %s182
      %p186 = scmp.eq.s32.totalorder %s20, 0
      %p187 = por %p185, %p186
      %p188 = scmp.ne.s32.totalorder %s180, %s182
      %p189 = scmp.eq.s32.totalorder %s25, 1
      %p190 = por %p188, %p189
      %p191 = scmp.ne.s32.totalorder %s182, %s183
      %p192 = scmp.eq.s32.totalorder %s25, 0
      %p193 = por %p191, %p192
      %p194 = scmp.ne.s32.totalorder %s182, %s183
      %p195 = scmp.eq.s32.totalorder %s26, 1
      %p196 = por %p194, %p195
      %p198 = scmp.ne.s32.totalorder %s183, %s197
      %p199 = scmp.eq.s32.totalorder %s26, 0
      %p200 = por %p198, %p199
      %s202 = sadd.s32 %s201, 1
      %p205 = scmp.eq.s32.totalorder %s20, 1
      %p206 = scmp.ne.s32.totalorder %s201, %s203
      %p207 = scmp.eq.s32.totalorder %s20, 0
      %p208 = por %p206, %p207
      %p209 = scmp.ne.s32.totalorder %s201, %s203
      %p210 = scmp.eq.s32.totalorder %s25, 1
      %p211 = por %p209, %p210
      %p212 = scmp.ne.s32.totalorder %s203, %s204
      %p213 = scmp.eq.s32.totalorder %s25, 0
      %p214 = por %p212, %p213
      %p215 = scmp.ne.s32.totalorder %s203, %s204
      %p216 = scmp.eq.s32.totalorder %s26, 1
      %p217 = por %p215, %p216
      %p219 = scmp.ne.s32.totalorder %s204, %s218
      %p220 = scmp.eq.s32.totalorder %s26, 0
      %p221 = por %p219, %p220
      %s222 = ssub.s32 %s20, %s27
      %p223 = scmp.eq.s32.totalorder %s222, 0
      %s225 = sadd.s32 %s224, 1
      %s226 = scalar_select %p223, %s224, %s225
      %p229 = pneg %p223
      %p230 = scmp.eq.s32.totalorder %s20, 1
      %p231 = por %p229, %p230
      %p232 = scmp.ne.s32.totalorder %s224, %s227
      %p233 = scmp.eq.s32.totalorder %s20, 0
      %p234 = por %p232, %p233
      %p235 = scmp.ne.s32.totalorder %s224, %s227
      %p236 = scmp.eq.s32.totalorder %s25, 1
      %p237 = por %p235, %p236
      %p238 = scmp.ne.s32.totalorder %s227, %s228
      %p239 = scmp.eq.s32.totalorder %s25, 0
      %p240 = por %p238, %p239
      %p241 = scmp.ne.s32.totalorder %s227, %s228
      %p242 = scmp.eq.s32.totalorder %s26, 1
      %p243 = por %p241, %p242
      %p245 = scmp.ne.s32.totalorder %s228, %s244
      %p246 = scmp.eq.s32.totalorder %s26, 0
      %p247 = por %p245, %p246
      %p248 = scmp.le.s32.totalorder 1, %s20
      %p249 = scmp.lt.s32.totalorder %s20, 3
      %p250 = pnand %p248, %p249
      %p251 = pneg %p250
      // Predicated region
      $region9: #{tpu_custom_call.1} parent=5 // pred_check
        _
      $region10: #{tpu_custom_call.1} parent=5 // pred_check_branch
        %253 = sbr.rel (%p250) target = $region12
      $region11: #{tpu_custom_call.1} parent=5 // pred_region
        %s254 = ssub.s32 %s20, 1
        // Predicated region
        $region13: #{tpu_custom_call.1} parent=11 // pred_check
          %p255 = pneg %p67
        $region14: #{tpu_custom_call.1} parent=11 // pred_check_branch
          %257 = sbr.rel (%p255) target = $region16
        $region15: #{tpu_custom_call.1} parent=11 // pred_region
          _
        $region16: #{tpu_custom_call.1} parent=11 // pred_fallthru
          _
        // Predicated region
        $region17: #{tpu_custom_call.1} parent=11 // pred_check
          %p258 = pneg %p88
        $region18: #{tpu_custom_call.1} parent=11 // pred_check_branch
          %260 = sbr.rel (%p258) target = $region20
        $region19: #{tpu_custom_call.1} parent=11 // pred_region
          _
        $region20: #{tpu_custom_call.1} parent=11 // pred_fallthru
          _
        // Predicated region
        $region21: #{tpu_custom_call.1} parent=11 // pred_check
          %p261 = pneg %p109
        $region22: #{tpu_custom_call.1} parent=11 // pred_check_branch
          %263 = sbr.rel (%p261) target = $region24
        $region23: #{tpu_custom_call.1} parent=11 // pred_region
          _
        $region24: #{tpu_custom_call.1} parent=11 // pred_fallthru
          _
        // Predicated region
        $region25: #{tpu_custom_call.1} parent=11 // pred_check
          %p264 = pneg %p130
        $region26: #{tpu_custom_call.1} parent=11 // pred_check_branch
          %266 = sbr.rel (%p264) target = $region28
        $region27: #{tpu_custom_call.1} parent=11 // pred_region
          _
        $region28: #{tpu_custom_call.1} parent=11 // pred_fallthru
          _
        // Predicated region
        $region29: #{tpu_custom_call.1} parent=11 // pred_check
          %p267 = pneg %p151
        $region30: #{tpu_custom_call.1} parent=11 // pred_check_branch
          %269 = sbr.rel (%p267) target = $region32
        $region31: #{tpu_custom_call.1} parent=11 // pred_region
          _
        $region32: #{tpu_custom_call.1} parent=11 // pred_fallthru
          _
        // Predicated region
        $region33: #{tpu_custom_call.1} parent=11 // pred_check
          %p270 = pneg %p172
        $region34: #{tpu_custom_call.1} parent=11 // pred_check_branch
          %272 = sbr.rel (%p270) target = $region36
        $region35: #{tpu_custom_call.1} parent=11 // pred_region
          _
        $region36: #{tpu_custom_call.1} parent=11 // pred_fallthru
          _
        // Predicated region
        $region37: #{tpu_custom_call.1} parent=11 // pred_check
          %p273 = pneg %p193
        $region38: #{tpu_custom_call.1} parent=11 // pred_check_branch
          %275 = sbr.rel (%p273) target = $region40
        $region39: #{tpu_custom_call.1} parent=11 // pred_region
          _
        $region40: #{tpu_custom_call.1} parent=11 // pred_fallthru
          _
        // Predicated region
        $region41: #{tpu_custom_call.1} parent=11 // pred_check
          %p276 = pneg %p214
        $region42: #{tpu_custom_call.1} parent=11 // pred_check_branch
          %278 = sbr.rel (%p276) target = $region44
        $region43: #{tpu_custom_call.1} parent=11 // pred_region
          _
        $region44: #{tpu_custom_call.1} parent=11 // pred_fallthru
          _
      $region12: #{tpu_custom_call.1} parent=5 // pred_fallthru
        _
      %p279 = scmp.lt.s32.totalorder %s20, 2
      // Predicated region
      $region45: #{tpu_custom_call.1} parent=5 // pred_check
        %p280 = pneg %p279
      $region46: #{tpu_custom_call.1} parent=5 // pred_check_branch
        %282 = sbr.rel (%p280) target = $region48
      $region47: #{tpu_custom_call.1} parent=5 // pred_region
        // Predicated region
        $region49: #{tpu_custom_call.1} parent=47 // pred_check
          %p283 = pneg %p40
        $region50: #{tpu_custom_call.1} parent=47 // pred_check_branch
          %285 = sbr.rel (%p283) target = $region52
        $region51: #{tpu_custom_call.1} parent=47 // pred_region
          %s286 = smul.u32 32, %s20
          %p287 = scmp.lt.s32.totalorder %s286, 63
          %s288 = scalar_select %p287, %s286, 63
          %s289 = smul.addr %s288, 8
          %s290 = scalar_lea.vmem %s0, %s289
          %s291 = smul.u32 32, %s20
        $region52: #{tpu_custom_call.1} parent=47 // pred_fallthru
          _
      $region48: #{tpu_custom_call.1} parent=5 // pred_fallthru
        _
      %p292 = scmp.le.s32.totalorder 1, %s20
      %p293 = scmp.lt.s32.totalorder %s20, 3
      %p294 = pnand %p292, %p293
      %p295 = pneg %p294
      // Predicated region
      $region53: #{tpu_custom_call.1} parent=5 // pred_check
        _
      $region54: #{tpu_custom_call.1} parent=5 // pred_check_branch
        %297 = sbr.rel (%p294) target = $region56
      $region55: #{tpu_custom_call.1} parent=5 // pred_region
        %s298 = ssub.s32 %s20, 1
        %s299 = smul.u32 32, %s25
        %p300 = scmp.lt.s32.totalorder %s299, 63
        %s301 = scalar_select %p300, %s299, 63
        %s302 = smul.addr %s301, 8
        %s303 = scalar_lea.vmem %s0, %s302
        %p304 = pneg %p46
        %p305 = pneg %p43
        %p306 = pneg %p67
        %p307 = pneg %p64
        %p308 = pneg %p88
        %p309 = pneg %p85
        %p310 = pneg %p109
        %p311 = pneg %p106
        %p312 = pneg %p130
        %p313 = pneg %p127
        %p314 = pneg %p151
        %p315 = pneg %p148
        %p316 = pneg %p172
        %p317 = pneg %p169
        %p318 = pneg %p193
        %p319 = pneg %p190
        %p320 = pneg %p214
        %p321 = pneg %p211
        %p322 = pneg %p240
        %p323 = pneg %p237
        %s324 = sand.u32 %s227, 1
        %s325 = scalar_lea.sflag [#allocation4], %s324
        %s326 = sand.u32 %s227, 1
        %s327 = smul.addr %s326, 2
        %s328 = scalar_lea.vmem [#allocation3], %s327
        %s329 = smul.u32 32, %s25
        %p330 = scmp.lt.s32.totalorder %s329, 63
        %s331 = scalar_select %p330, %s329, 63
        %s332 = smul.addr %s331, 8
        %s333 = scalar_lea.vmem %s0, %s332
        %s334 = smul.u32 32, %s25
        %v335 = vld [vmem:[%s333] sm:$0xff]
        %v336 = vld [vmem:[%s333 + $0x8] sm:$0xff]
        %v337 = vld [vmem:[%s333 + $0x10] sm:$0xff]
        %v338 = vld [vmem:[%s333 + $0x18] sm:$0xff]
        %v339 = vld [vmem:[%s333 + $0x20] sm:$0xff]
        %v340 = vld [vmem:[%s333 + $0x28] sm:$0xff]
        %v341 = vld [vmem:[%s333 + $0x30] sm:$0xff]
        %v342 = vld [vmem:[%s333 + $0x38] sm:$0xff]
        %v343 = vld [vmem:[%s333 + $0x40] sm:$0xff]
        %v344 = vld [vmem:[%s333 + $0x48] sm:$0xff]
        %v345 = vld [vmem:[%s333 + $0x50] sm:$0xff]
        %v346 = vld [vmem:[%s333 + $0x58] sm:$0xff]
        %v347 = vld [vmem:[%s333 + $0x60] sm:$0xff]
        %v348 = vld [vmem:[%s333 + $0x68] sm:$0xff]
        %v349 = vld [vmem:[%s333 + $0x70] sm:$0xff]
        %v350 = vld [vmem:[%s333 + $0x78] sm:$0xff]
        %v351 = vld [vmem:[%s1] sm:$0xff]
        %v352 = vld [vmem:[%s1 + $0x8] sm:$0xff]
        %v353 = vld [vmem:[%s1 + $0x10] sm:$0xff]
        %v354 = vld [vmem:[%s1 + $0x18] sm:$0xff]
        %v355 = vld [vmem:[%s1 + $0x20] sm:$0xff]
        %v356 = vld [vmem:[%s1 + $0x28] sm:$0xff]
        %v357 = vld [vmem:[%s1 + $0x30] sm:$0xff]
        %v358 = vld [vmem:[%s1 + $0x38] sm:$0xff]
        %v359 = vld [vmem:[%s2] sm:$0x1]
        %v361 = vlaneseq
        %v362 = vshrl.u32 %v361, 7
        %v363 = vsub.s32 0, %v362
        %v364 = vrot.slane %v359, %v363
        %vm366 = vcmask 523264
        %v368 = vsel %vm366, %v335, 0
        %v371 = vsel %vm366, %v336, 0
        %v374 = vsel %vm366, %v337, 0
        %v377 = vsel %vm366, %v338, 0
        %v380 = vsel %vm366, %v339, 0
        %v383 = vsel %vm366, %v340, 0
        %v386 = vsel %vm366, %v341, 0
        %v389 = vsel %vm366, %v342, 0
        %v392 = vsel %vm366, %v343, 0
        %v395 = vsel %vm366, %v344, 0
        %v398 = vsel %vm366, %v345, 0
        %v401 = vsel %vm366, %v346, 0
        %v404 = vsel %vm366, %v347, 0
        %v407 = vsel %vm366, %v348, 0
        %v410 = vsel %vm366, %v349, 0
        %v413 = vsel %vm366, %v350, 0
        %415 = vmatprep.subr.mxu0 0.0
        %416 = vmatpush1.msra.mxu0 %v351
        %417 = vmatprep.subr.mxu0 0.0
        %418 = vmatpush1.msra.mxu0 %v352
        %419 = vmatprep.subr.mxu0 0.0
        %420 = vmatpush1.msra.mxu0 %v353
        %421 = vmatprep.subr.mxu0 0.0
        %422 = vmatpush1.msra.mxu0 %v354
        %423 = vmatprep.subr.mxu0 0.0
        %424 = vmatpush1.msra.mxu0 %v355
        %425 = vmatprep.subr.mxu0 0.0
        %426 = vmatpush1.msra.mxu0 %v356
        %427 = vmatprep.subr.mxu0 0.0
        %428 = vmatpush1.msra.mxu0 %v357
        %429 = vmatprep.subr.mxu0 0.0
        %430 = vmatpush1.msra.mxu0 %v358
        %431 = vmatprep.subr.mxu0 0.0
        %432 = vmatpush1.msra.mxu0 0.0
        %433 = vmatprep.subr.mxu0 0.0
        %434 = vmatpush1.msra.mxu0 0.0
        %435 = vmatprep.subr.mxu0 0.0
        %436 = vmatpush1.msra.mxu0 0.0
        %437 = vmatprep.subr.mxu0 0.0
        %438 = vmatpush1.msra.mxu0 0.0
        %439 = vmatprep.subr.mxu0 0.0
        %440 = vmatpush1.msra.mxu0 0.0
        %441 = vmatprep.subr.mxu0 0.0
        %442 = vmatpush1.msra.mxu0 0.0
        %443 = vmatprep.subr.mxu0 0.0
        %444 = vmatpush1.msra.mxu0 0.0
        %445 = vmatprep.subr.mxu0 0.0
        %446 = vmatpush1.msra.mxu0 0.0
        %447 = vmatprep.subr.mxu0 0.0
        %448 = vmatpush1.msra.mxu0 0.0
        %449 = vmatprep.subr.mxu0 0.0
        %450 = vmatpush1.msra.mxu0 0.0
        %451 = vmatprep.subr.mxu0 0.0
        %452 = vmatpush1.msra.mxu0 0.0
        %453 = vmatprep.subr.mxu0 0.0
        %454 = vmatpush1.msra.mxu0 0.0
        %455 = vmatprep.subr.mxu0 0.0
        %456 = vmatpush1.msra.mxu0 0.0
        %457 = vmatprep.subr.mxu0 0.0
        %458 = vmatpush1.msra.mxu0 0.0
        %459 = vmatprep.subr.mxu0 0.0
        %460 = vmatpush1.msra.mxu0 0.0
        %461 = vmatprep.subr.mxu0 0.0
        %462 = vmatpush1.msra.mxu0 0.0
        %463 = vmatprep.subr.mxu0 0.0
        %464 = vmatpush1.msra.mxu0 0.0
        %465 = vmatprep.subr.mxu0 0.0
        %466 = vmatpush1.msra.mxu0 0.0
        %467 = vmatprep.subr.mxu0 0.0
        %468 = vmatpush1.msra.mxu0 0.0
        %469 = vmatprep.subr.mxu0 0.0
        %470 = vmatpush1.msra.mxu0 0.0
        %471 = vmatprep.subr.mxu0 0.0
        %472 = vmatpush1.msra.mxu0 0.0
        %473 = vmatprep.subr.mxu0 0.0
        %474 = vmatpush1.msra.mxu0 0.0
        %475 = vmatprep.subr.mxu0 0.0
        %476 = vmatpush1.msra.mxu0 0.0
        %477 = vmatprep.subr.mxu0 0.0
        %478 = vmatpush1.msra.mxu0 0.0
        %479 = vmatprep.mubr.f32.mxu0 0.0
        %480 = vmatmul.mubr.f32.gmra.mrb[0].mxu0 %v368
        %v481 = vpop.f32.mrb[0].mxu0
        %v482 = vadd.f32 %v364, %v481
        %v483 = vpop.f32.mrb[0].mxu0
        %484 = vmatprep.mubr.f32.mxu0 0.0
        %485 = vmatmul.mubr.f32.gmra.mrb[0].mxu0 %v371
        %v486 = vpop.f32.mrb[0].mxu0
        %v487 = vadd.f32 %v364, %v486
        %v488 = vpop.f32.mrb[0].mxu0
        %489 = vmatprep.mubr.f32.mxu0 0.0
        %490 = vmatmul.mubr.f32.gmra.mrb[0].mxu0 %v374
        %v491 = vpop.f32.mrb[0].mxu0
        %v492 = vadd.f32 %v364, %v491
        %v493 = vpop.f32.mrb[0].mxu0
        %494 = vmatprep.mubr.f32.mxu0 0.0
        %495 = vmatmul.mubr.f32.gmra.mrb[0].mxu0 %v377
        %v496 = vpop.f32.mrb[0].mxu0
        %v497 = vadd.f32 %v364, %v496
        %v498 = vpop.f32.mrb[0].mxu0
        %499 = vmatprep.mubr.f32.mxu0 0.0
        %500 = vmatmul.mubr.f32.gmra.mrb[0].mxu0 %v380
        %v501 = vpop.f32.mrb[0].mxu0
        %v502 = vadd.f32 %v364, %v501
        %v503 = vpop.f32.mrb[0].mxu0
        %504 = vmatprep.mubr.f32.mxu0 0.0
        %505 = vmatmul.mubr.f32.gmra.mrb[0].mxu0 %v383
        %v506 = vpop.f32.mrb[0].mxu0
        %v507 = vadd.f32 %v364, %v506
        %v508 = vpop.f32.mrb[0].mxu0
        %509 = vmatprep.mubr.f32.mxu0 0.0
        %510 = vmatmul.mubr.f32.gmra.mrb[0].mxu0 %v386
        %v511 = vpop.f32.mrb[0].mxu0
        %v512 = vadd.f32 %v364, %v511
        %v513 = vpop.f32.mrb[0].mxu0
        %514 = vmatprep.mubr.f32.mxu0 0.0
        %515 = vmatmul.mubr.f32.gmra.mrb[0].mxu0 %v389
        %v516 = vpop.f32.mrb[0].mxu0
        %v517 = vadd.f32 %v364, %v516
        %v518 = vpop.f32.mrb[0].mxu0
        %519 = vmatprep.mubr.f32.mxu0 0.0
        %520 = vmatmul.mubr.f32.gmra.mrb[0].mxu0 %v392
        %v521 = vpop.f32.mrb[0].mxu0
        %v522 = vadd.f32 %v364, %v521
        %v523 = vpop.f32.mrb[0].mxu0
        %524 = vmatprep.mubr.f32.mxu0 0.0
        %525 = vmatmul.mubr.f32.gmra.mrb[0].mxu0 %v395
        %v526 = vpop.f32.mrb[0].mxu0
        %v527 = vadd.f32 %v364, %v526
        %v528 = vpop.f32.mrb[0].mxu0
        %529 = vmatprep.mubr.f32.mxu0 0.0
        %530 = vmatmul.mubr.f32.gmra.mrb[0].mxu0 %v398
        %v531 = vpop.f32.mrb[0].mxu0
        %v532 = vadd.f32 %v364, %v531
        %v533 = vpop.f32.mrb[0].mxu0
        %534 = vmatprep.mubr.f32.mxu0 0.0
        %535 = vmatmul.mubr.f32.gmra.mrb[0].mxu0 %v401
        %v536 = vpop.f32.mrb[0].mxu0
        %v537 = vadd.f32 %v364, %v536
        %v538 = vpop.f32.mrb[0].mxu0
        %539 = vmatprep.mubr.f32.mxu0 0.0
        %540 = vmatmul.mubr.f32.gmra.mrb[0].mxu0 %v404
        %v541 = vpop.f32.mrb[0].mxu0
        %v542 = vadd.f32 %v364, %v541
        %v543 = vpop.f32.mrb[0].mxu0
        %544 = vmatprep.mubr.f32.mxu0 0.0
        %545 = vmatmul.mubr.f32.gmra.mrb[0].mxu0 %v407
        %v546 = vpop.f32.mrb[0].mxu0
        %v547 = vadd.f32 %v364, %v546
        %v548 = vpop.f32.mrb[0].mxu0
        %549 = vmatprep.mubr.f32.mxu0 0.0
        %550 = vmatmul.mubr.f32.gmra.mrb[0].mxu0 %v410
        %v551 = vpop.f32.mrb[0].mxu0
        %v552 = vadd.f32 %v364, %v551
        %v553 = vpop.f32.mrb[0].mxu0
        %554 = vmatprep.mubr.f32.mxu0 0.0
        %555 = vmatmul.mubr.f32.gmra.mrb[0].mxu0 %v413
        %v556 = vpop.f32.mrb[0].mxu0
        %v557 = vadd.f32 %v364, %v556
        %v558 = vpop.f32.mrb[0].mxu0
        %559 = vdwg.mxu0
        %vm560 = vcmp.gt.f32.partialorder %v482, 0.0
        %vm561 = vcmp.gt.f32.partialorder %v487, 0.0
        %vm562 = vcmp.gt.f32.partialorder %v492, 0.0
        %vm563 = vcmp.gt.f32.partialorder %v497, 0.0
        %vm564 = vcmp.gt.f32.partialorder %v502, 0.0
        %vm565 = vcmp.gt.f32.partialorder %v507, 0.0
        %vm566 = vcmp.gt.f32.partialorder %v512, 0.0
        %vm567 = vcmp.gt.f32.partialorder %v517, 0.0
        %vm568 = vcmp.gt.f32.partialorder %v522, 0.0
        %vm569 = vcmp.gt.f32.partialorder %v527, 0.0
        %vm570 = vcmp.gt.f32.partialorder %v532, 0.0
        %vm571 = vcmp.gt.f32.partialorder %v537, 0.0
        %vm572 = vcmp.gt.f32.partialorder %v542, 0.0
        %vm573 = vcmp.gt.f32.partialorder %v547, 0.0
        %vm574 = vcmp.gt.f32.partialorder %v552, 0.0
        %vm575 = vcmp.gt.f32.partialorder %v557, 0.0
        %v576 = vmul.f32 %v482, 0.2
        %v577 = vmul.f32 %v487, 0.2
        %v578 = vmul.f32 %v492, 0.2
        %v579 = vmul.f32 %v497, 0.2
        %v580 = vmul.f32 %v502, 0.2
        %v581 = vmul.f32 %v507, 0.2
        %v582 = vmul.f32 %v512, 0.2
        %v583 = vmul.f32 %v517, 0.2
        %v584 = vmul.f32 %v522, 0.2
        %v585 = vmul.f32 %v527, 0.2
        %v586 = vmul.f32 %v532, 0.2
        %v587 = vmul.f32 %v537, 0.2
        %v588 = vmul.f32 %v542, 0.2
        %v589 = vmul.f32 %v547, 0.2
        %v590 = vmul.f32 %v552, 0.2
        %v591 = vmul.f32 %v557, 0.2
        %v592 = vsel %vm560, %v482, %v576
        %v593 = vsel %vm561, %v487, %v577
        %v594 = vsel %vm562, %v492, %v578
        %v595 = vsel %vm563, %v497, %v579
        %v596 = vsel %vm564, %v502, %v580
        %v597 = vsel %vm565, %v507, %v581
        %v598 = vsel %vm566, %v512, %v582
        %v599 = vsel %vm567, %v517, %v583
        %v600 = vsel %vm568, %v522, %v584
        %v601 = vsel %vm569, %v527, %v585
        %v602 = vsel %vm570, %v532, %v586
        %v603 = vsel %vm571, %v537, %v587
        %v604 = vsel %vm572, %v542, %v588
        %v605 = vsel %vm573, %v547, %v589
        %v606 = vsel %vm574, %v552, %v590
        %v607 = vsel %vm575, %v557, %v591
        %v608 = vld [vmem:[%s3] sm:$0xff]
        %v609 = vld [vmem:[%s3 + $0x8] sm:$0xff]
        %v610 = vld [vmem:[%s3 + $0x10] sm:$0xff]
        %v611 = vld [vmem:[%s3 + $0x18] sm:$0xff]
        %v612 = vld [vmem:[%s3 + $0x20] sm:$0xff]
        %v613 = vld [vmem:[%s3 + $0x28] sm:$0xff]
        %v614 = vld [vmem:[%s3 + $0x30] sm:$0xff]
        %v615 = vld [vmem:[%s3 + $0x38] sm:$0xff]
        %v616 = vld [vmem:[%s3 + $0x40] sm:$0xff]
        %v617 = vld [vmem:[%s3 + $0x48] sm:$0xff]
        %v618 = vld [vmem:[%s3 + $0x50] sm:$0xff]
        %v619 = vld [vmem:[%s3 + $0x58] sm:$0xff]
        %v620 = vld [vmem:[%s3 + $0x60] sm:$0xff]
        %v621 = vld [vmem:[%s3 + $0x68] sm:$0xff]
        %v622 = vld [vmem:[%s3 + $0x70] sm:$0xff]
        %v623 = vld [vmem:[%s3 + $0x78] sm:$0xff]
        %v624 = vld [vmem:[%s3 + $0x80] sm:$0xff]
        %v625 = vld [vmem:[%s3 + $0x88] sm:$0xff]
        %v626 = vld [vmem:[%s3 + $0x90] sm:$0xff]
        %v627 = vld [vmem:[%s3 + $0x98] sm:$0xff]
        %v628 = vld [vmem:[%s3 + $0xa0] sm:$0xff]
        %v629 = vld [vmem:[%s3 + $0xa8] sm:$0xff]
        %v630 = vld [vmem:[%s3 + $0xb0] sm:$0xff]
        %v631 = vld [vmem:[%s3 + $0xb8] sm:$0xff]
        %v632 = vld [vmem:[%s3 + $0xc0] sm:$0xff]
        %v633 = vld [vmem:[%s3 + $0xc8] sm:$0xff]
        %v634 = vld [vmem:[%s3 + $0xd0] sm:$0xff]
        %v635 = vld [vmem:[%s3 + $0xd8] sm:$0xff]
        %v636 = vld [vmem:[%s3 + $0xe0] sm:$0xff]
        %v637 = vld [vmem:[%s3 + $0xe8] sm:$0xff]
        %v638 = vld [vmem:[%s3 + $0xf0] sm:$0xff]
        %v639 = vld [vmem:[%s3 + $0xf8] sm:$0xff]
        %v640 = vld [vmem:[%s4] sm:$0x3]
        %v642 = vlaneseq
        %v643 = vshrl.u32 %v642, 7
        %v644 = vsub.s32 0, %v643
        %v645 = vrot.slane %v640, %v644
        %v646 = vlaneseq
        %v647 = vshrl.u32 %v646, 7
        %v648 = vsub.s32 1, %v647
        %v649 = vrot.slane %v640, %v648
        %652 = vmatprep.subr.mxu0 %v609
        %653 = vmatpush1.msra.mxu0 %v608
        %654 = vmatprep.subr.mxu0 %v611
        %655 = vmatpush1.msra.mxu0 %v610
        %656 = vmatprep.subr.mxu0 %v613
        %657 = vmatpush1.msra.mxu0 %v612
        %658 = vmatprep.subr.mxu0 %v615
        %659 = vmatpush1.msra.mxu0 %v614
        %660 = vmatprep.subr.mxu0 %v617
        %661 = vmatpush1.msra.mxu0 %v616
        %662 = vmatprep.subr.mxu0 %v619
        %663 = vmatpush1.msra.mxu0 %v618
        %664 = vmatprep.subr.mxu0 %v621
        %665 = vmatpush1.msra.mxu0 %v620
        %666 = vmatprep.subr.mxu0 %v623
        %667 = vmatpush1.msra.mxu0 %v622
        %668 = vmatprep.subr.mxu0 %v625
        %669 = vmatpush1.msra.mxu0 %v624
        %670 = vmatprep.subr.mxu0 %v627
        %671 = vmatpush1.msra.mxu0 %v626
        %672 = vmatprep.subr.mxu0 %v629
        %673 = vmatpush1.msra.mxu0 %v628
        %674 = vmatprep.subr.mxu0 %v631
        %675 = vmatpush1.msra.mxu0 %v630
        %676 = vmatprep.subr.mxu0 %v633
        %677 = vmatpush1.msra.mxu0 %v632
        %678 = vmatprep.subr.mxu0 %v635
        %679 = vmatpush1.msra.mxu0 %v634
        %680 = vmatprep.subr.mxu0 %v637
        %681 = vmatpush1.msra.mxu0 %v636
        %682 = vmatprep.subr.mxu0 %v639
        %683 = vmatpush1.msra.mxu0 %v638
        %684 = vmatprep.subr.mxu0 0.0
        %685 = vmatpush1.msra.mxu0 0.0
        %686 = vmatprep.subr.mxu0 0.0
        %687 = vmatpush1.msra.mxu0 0.0
        %688 = vmatprep.subr.mxu0 0.0
        %689 = vmatpush1.msra.mxu0 0.0
        %690 = vmatprep.subr.mxu0 0.0
        %691 = vmatpush1.msra.mxu0 0.0
        %692 = vmatprep.subr.mxu0 0.0
        %693 = vmatpush1.msra.mxu0 0.0
        %694 = vmatprep.subr.mxu0 0.0
        %695 = vmatpush1.msra.mxu0 0.0
        %696 = vmatprep.subr.mxu0 0.0
        %697 = vmatpush1.msra.mxu0 0.0
        %698 = vmatprep.subr.mxu0 0.0
        %699 = vmatpush1.msra.mxu0 0.0
        %700 = vmatprep.subr.mxu0 0.0
        %701 = vmatpush1.msra.mxu0 0.0
        %702 = vmatprep.subr.mxu0 0.0
        %703 = vmatpush1.msra.mxu0 0.0
        %704 = vmatprep.subr.mxu0 0.0
        %705 = vmatpush1.msra.mxu0 0.0
        %706 = vmatprep.subr.mxu0 0.0
        %707 = vmatpush1.msra.mxu0 0.0
        %708 = vmatprep.subr.mxu0 0.0
        %709 = vmatpush1.msra.mxu0 0.0
        %710 = vmatprep.subr.mxu0 0.0
        %711 = vmatpush1.msra.mxu0 0.0
        %712 = vmatprep.subr.mxu0 0.0
        %713 = vmatpush1.msra.mxu0 0.0
        %714 = vmatprep.subr.mxu0 0.0
        %715 = vmatpush1.msra.mxu0 0.0
        %716 = vmatprep.mubr.f32.mxu0 0.0
        %717 = vmatmul.mubr.f32.gmra.mrb[0].mxu0 %v592
        %v718 = vpop.f32.mrb[0].mxu0
        %v719 = vadd.f32 %v645, %v718
        %v720 = vpop.f32.mrb[0].mxu0
        %v721 = vadd.f32 %v649, %v720
        %722 = vmatprep.mubr.f32.mxu0 0.0
        %723 = vmatmul.mubr.f32.gmra.mrb[0].mxu0 %v593
        %v724 = vpop.f32.mrb[0].mxu0
        %v725 = vadd.f32 %v645, %v724
        %v726 = vpop.f32.mrb[0].mxu0
        %v727 = vadd.f32 %v649, %v726
        %728 = vmatprep.mubr.f32.mxu0 0.0
        %729 = vmatmul.mubr.f32.gmra.mrb[0].mxu0 %v594
        %v730 = vpop.f32.mrb[0].mxu0
        %v731 = vadd.f32 %v645, %v730
        %v732 = vpop.f32.mrb[0].mxu0
        %v733 = vadd.f32 %v649, %v732
        %734 = vmatprep.mubr.f32.mxu0 0.0
        %735 = vmatmul.mubr.f32.gmra.mrb[0].mxu0 %v595
        %v736 = vpop.f32.mrb[0].mxu0
        %v737 = vadd.f32 %v645, %v736
        %v738 = vpop.f32.mrb[0].mxu0
        %v739 = vadd.f32 %v649, %v738
        %740 = vmatprep.mubr.f32.mxu0 0.0
        %741 = vmatmul.mubr.f32.gmra.mrb[0].mxu0 %v596
        %v742 = vpop.f32.mrb[0].mxu0
        %v743 = vadd.f32 %v645, %v742
        %v744 = vpop.f32.mrb[0].mxu0
        %v745 = vadd.f32 %v649, %v744
        %746 = vmatprep.mubr.f32.mxu0 0.0
        %747 = vmatmul.mubr.f32.gmra.mrb[0].mxu0 %v597
        %v748 = vpop.f32.mrb[0].mxu0
        %v749 = vadd.f32 %v645, %v748
        %v750 = vpop.f32.mrb[0].mxu0
        %v751 = vadd.f32 %v649, %v750
        %752 = vmatprep.mubr.f32.mxu0 0.0
        %753 = vmatmul.mubr.f32.gmra.mrb[0].mxu0 %v598
        %v754 = vpop.f32.mrb[0].mxu0
        %v755 = vadd.f32 %v645, %v754
        %v756 = vpop.f32.mrb[0].mxu0
        %v757 = vadd.f32 %v649, %v756
        %758 = vmatprep.mubr.f32.mxu0 0.0
        %759 = vmatmul.mubr.f32.gmra.mrb[0].mxu0 %v599
        %v760 = vpop.f32.mrb[0].mxu0
        %v761 = vadd.f32 %v645, %v760
        %v762 = vpop.f32.mrb[0].mxu0
        %v763 = vadd.f32 %v649, %v762
        %764 = vmatprep.mubr.f32.mxu0 0.0
        %765 = vmatmul.mubr.f32.gmra.mrb[0].mxu0 %v600
        %v766 = vpop.f32.mrb[0].mxu0
        %v767 = vadd.f32 %v645, %v766
        %v768 = vpop.f32.mrb[0].mxu0
        %v769 = vadd.f32 %v649, %v768
        %770 = vmatprep.mubr.f32.mxu0 0.0
        %771 = vmatmul.mubr.f32.gmra.mrb[0].mxu0 %v601
        %v772 = vpop.f32.mrb[0].mxu0
        %v773 = vadd.f32 %v645, %v772
        %v774 = vpop.f32.mrb[0].mxu0
        %v775 = vadd.f32 %v649, %v774
        %776 = vmatprep.mubr.f32.mxu0 0.0
        %777 = vmatmul.mubr.f32.gmra.mrb[0].mxu0 %v602
        %v778 = vpop.f32.mrb[0].mxu0
        %v779 = vadd.f32 %v645, %v778
        %v780 = vpop.f32.mrb[0].mxu0
        %v781 = vadd.f32 %v649, %v780
        %782 = vmatprep.mubr.f32.mxu0 0.0
        %783 = vmatmul.mubr.f32.gmra.mrb[0].mxu0 %v603
        %v784 = vpop.f32.mrb[0].mxu0
        %v785 = vadd.f32 %v645, %v784
        %v786 = vpop.f32.mrb[0].mxu0
        %v787 = vadd.f32 %v649, %v786
        %788 = vmatprep.mubr.f32.mxu0 0.0
        %789 = vmatmul.mubr.f32.gmra.mrb[0].mxu0 %v604
        %v790 = vpop.f32.mrb[0].mxu0
        %v791 = vadd.f32 %v645, %v790
        %v792 = vpop.f32.mrb[0].mxu0
        %v793 = vadd.f32 %v649, %v792
        %794 = vmatprep.mubr.f32.mxu0 0.0
        %795 = vmatmul.mubr.f32.gmra.mrb[0].mxu0 %v605
        %v796 = vpop.f32.mrb[0].mxu0
        %v797 = vadd.f32 %v645, %v796
        %v798 = vpop.f32.mrb[0].mxu0
        %v799 = vadd.f32 %v649, %v798
        %800 = vmatprep.mubr.f32.mxu0 0.0
        %801 = vmatmul.mubr.f32.gmra.mrb[0].mxu0 %v606
        %v802 = vpop.f32.mrb[0].mxu0
        %v803 = vadd.f32 %v645, %v802
        %v804 = vpop.f32.mrb[0].mxu0
        %v805 = vadd.f32 %v649, %v804
        %806 = vmatprep.mubr.f32.mxu0 0.0
        %807 = vmatmul.mubr.f32.gmra.mrb[0].mxu0 %v607
        %v808 = vpop.f32.mrb[0].mxu0
        %v809 = vadd.f32 %v645, %v808
        %v810 = vpop.f32.mrb[0].mxu0
        %v811 = vadd.f32 %v649, %v810
        %812 = vdwg.mxu0
        %vm813 = vcmp.gt.f32.partialorder %v719, 0.0
        %vm814 = vcmp.gt.f32.partialorder %v721, 0.0
        %vm815 = vcmp.gt.f32.partialorder %v725, 0.0
        %vm816 = vcmp.gt.f32.partialorder %v727, 0.0
        %vm817 = vcmp.gt.f32.partialorder %v731, 0.0
        %vm818 = vcmp.gt.f32.partialorder %v733, 0.0
        %vm819 = vcmp.gt.f32.partialorder %v737, 0.0
        %vm820 = vcmp.gt.f32.partialorder %v739, 0.0
        %vm821 = vcmp.gt.f32.partialorder %v743, 0.0
        %vm822 = vcmp.gt.f32.partialorder %v745, 0.0
        %vm823 = vcmp.gt.f32.partialorder %v749, 0.0
        %vm824 = vcmp.gt.f32.partialorder %v751, 0.0
        %vm825 = vcmp.gt.f32.partialorder %v755, 0.0
        %vm826 = vcmp.gt.f32.partialorder %v757, 0.0
        %vm827 = vcmp.gt.f32.partialorder %v761, 0.0
        %vm828 = vcmp.gt.f32.partialorder %v763, 0.0
        %vm829 = vcmp.gt.f32.partialorder %v767, 0.0
        %vm830 = vcmp.gt.f32.partialorder %v769, 0.0
        %vm831 = vcmp.gt.f32.partialorder %v773, 0.0
        %vm832 = vcmp.gt.f32.partialorder %v775, 0.0
        %vm833 = vcmp.gt.f32.partialorder %v779, 0.0
        %vm834 = vcmp.gt.f32.partialorder %v781, 0.0
        %vm835 = vcmp.gt.f32.partialorder %v785, 0.0
        %vm836 = vcmp.gt.f32.partialorder %v787, 0.0
        %vm837 = vcmp.gt.f32.partialorder %v791, 0.0
        %vm838 = vcmp.gt.f32.partialorder %v793, 0.0
        %vm839 = vcmp.gt.f32.partialorder %v797, 0.0
        %vm840 = vcmp.gt.f32.partialorder %v799, 0.0
        %vm841 = vcmp.gt.f32.partialorder %v803, 0.0
        %vm842 = vcmp.gt.f32.partialorder %v805, 0.0
        %vm843 = vcmp.gt.f32.partialorder %v809, 0.0
        %vm844 = vcmp.gt.f32.partialorder %v811, 0.0
        %v845 = vmul.f32 %v719, 0.2
        %v846 = vmul.f32 %v721, 0.2
        %v847 = vmul.f32 %v725, 0.2
        %v848 = vmul.f32 %v727, 0.2
        %v849 = vmul.f32 %v731, 0.2
        %v850 = vmul.f32 %v733, 0.2
        %v851 = vmul.f32 %v737, 0.2
        %v852 = vmul.f32 %v739, 0.2
        %v853 = vmul.f32 %v743, 0.2
        %v854 = vmul.f32 %v745, 0.2
        %v855 = vmul.f32 %v749, 0.2
        %v856 = vmul.f32 %v751, 0.2
        %v857 = vmul.f32 %v755, 0.2
        %v858 = vmul.f32 %v757, 0.2
        %v859 = vmul.f32 %v761, 0.2
        %v860 = vmul.f32 %v763, 0.2
        %v861 = vmul.f32 %v767, 0.2
        %v862 = vmul.f32 %v769, 0.2
        %v863 = vmul.f32 %v773, 0.2
        %v864 = vmul.f32 %v775, 0.2
        %v865 = vmul.f32 %v779, 0.2
        %v866 = vmul.f32 %v781, 0.2
        %v867 = vmul.f32 %v785, 0.2
        %v868 = vmul.f32 %v787, 0.2
        %v869 = vmul.f32 %v791, 0.2
        %v870 = vmul.f32 %v793, 0.2
        %v871 = vmul.f32 %v797, 0.2
        %v872 = vmul.f32 %v799, 0.2
        %v873 = vmul.f32 %v803, 0.2
        %v874 = vmul.f32 %v805, 0.2
        %v875 = vmul.f32 %v809, 0.2
        %v876 = vmul.f32 %v811, 0.2
        %v877 = vsel %vm813, %v719, %v845
        %v878 = vsel %vm814, %v721, %v846
        %v879 = vsel %vm815, %v725, %v847
        %v880 = vsel %vm816, %v727, %v848
        %v881 = vsel %vm817, %v731, %v849
        %v882 = vsel %vm818, %v733, %v850
        %v883 = vsel %vm819, %v737, %v851
        %v884 = vsel %vm820, %v739, %v852
        %v885 = vsel %vm821, %v743, %v853
        %v886 = vsel %vm822, %v745, %v854
        %v887 = vsel %vm823, %v749, %v855
        %v888 = vsel %vm824, %v751, %v856
        %v889 = vsel %vm825, %v755, %v857
        %v890 = vsel %vm826, %v757, %v858
        %v891 = vsel %vm827, %v761, %v859
        %v892 = vsel %vm828, %v763, %v860
        %v893 = vsel %vm829, %v767, %v861
        %v894 = vsel %vm830, %v769, %v862
        %v895 = vsel %vm831, %v773, %v863
        %v896 = vsel %vm832, %v775, %v864
        %v897 = vsel %vm833, %v779, %v865
        %v898 = vsel %vm834, %v781, %v866
        %v899 = vsel %vm835, %v785, %v867
        %v900 = vsel %vm836, %v787, %v868
        %v901 = vsel %vm837, %v791, %v869
        %v902 = vsel %vm838, %v793, %v870
        %v903 = vsel %vm839, %v797, %v871
        %v904 = vsel %vm840, %v799, %v872
        %v905 = vsel %vm841, %v803, %v873
        %v906 = vsel %vm842, %v805, %v874
        %v907 = vsel %vm843, %v809, %v875
        %v908 = vsel %vm844, %v811, %v876
        %v909 = vld [vmem:[%s5] sm:$0xff]
        %v910 = vld [vmem:[%s5 + $0x8] sm:$0xff]
        %v911 = vld [vmem:[%s5 + $0x10] sm:$0xff]
        %v912 = vld [vmem:[%s5 + $0x18] sm:$0xff]
        %v913 = vld [vmem:[%s5 + $0x20] sm:$0xff]
        %v914 = vld [vmem:[%s5 + $0x28] sm:$0xff]
        %v915 = vld [vmem:[%s5 + $0x30] sm:$0xff]
        %v916 = vld [vmem:[%s5 + $0x38] sm:$0xff]
        %v917 = vld [vmem:[%s5 + $0x40] sm:$0xff]
        %v918 = vld [vmem:[%s5 + $0x48] sm:$0xff]
        %v919 = vld [vmem:[%s5 + $0x50] sm:$0xff]
        %v920 = vld [vmem:[%s5 + $0x58] sm:$0xff]
        %v921 = vld [vmem:[%s5 + $0x60] sm:$0xff]
        %v922 = vld [vmem:[%s5 + $0x68] sm:$0xff]
        %v923 = vld [vmem:[%s5 + $0x70] sm:$0xff]
        %v924 = vld [vmem:[%s5 + $0x78] sm:$0xff]
        %v925 = vld [vmem:[%s5 + $0x80] sm:$0xff]
        %v926 = vld [vmem:[%s5 + $0x88] sm:$0xff]
        %v927 = vld [vmem:[%s5 + $0x90] sm:$0xff]
        %v928 = vld [vmem:[%s5 + $0x98] sm:$0xff]
        %v929 = vld [vmem:[%s5 + $0xa0] sm:$0xff]
        %v930 = vld [vmem:[%s5 + $0xa8] sm:$0xff]
        %v931 = vld [vmem:[%s5 + $0xb0] sm:$0xff]
        %v932 = vld [vmem:[%s5 + $0xb8] sm:$0xff]
        %v933 = vld [vmem:[%s5 + $0xc0] sm:$0xff]
        %v934 = vld [vmem:[%s5 + $0xc8] sm:$0xff]
        %v935 = vld [vmem:[%s5 + $0xd0] sm:$0xff]
        %v936 = vld [vmem:[%s5 + $0xd8] sm:$0xff]
        %v937 = vld [vmem:[%s5 + $0xe0] sm:$0xff]
        %v938 = vld [vmem:[%s5 + $0xe8] sm:$0xff]
        %v939 = vld [vmem:[%s5 + $0xf0] sm:$0xff]
        %v940 = vld [vmem:[%s5 + $0xf8] sm:$0xff]
        %v941 = vld [vmem:[%s6] sm:$0x1]
        %v943 = vlaneseq
        %v944 = vshrl.u32 %v943, 7
        %v945 = vsub.s32 0, %v944
        %v946 = vrot.slane %v941, %v945
        %948 = vmatprep.subr.mxu0 0.0
        %949 = vmatpush1.msra.mxu0 %v909
        %950 = vmatprep.subr.mxu0 0.0
        %951 = vmatpush1.msra.mxu0 %v910
        %952 = vmatprep.subr.mxu0 0.0
        %953 = vmatpush1.msra.mxu0 %v911
        %954 = vmatprep.subr.mxu0 0.0
        %955 = vmatpush1.msra.mxu0 %v912
        %956 = vmatprep.subr.mxu0 0.0
        %957 = vmatpush1.msra.mxu0 %v913
        %958 = vmatprep.subr.mxu0 0.0
        %959 = vmatpush1.msra.mxu0 %v914
        %960 = vmatprep.subr.mxu0 0.0
        %961 = vmatpush1.msra.mxu0 %v915
        %962 = vmatprep.subr.mxu0 0.0
        %963 = vmatpush1.msra.mxu0 %v916
        %964 = vmatprep.subr.mxu0 0.0
        %965 = vmatpush1.msra.mxu0 %v917
        %966 = vmatprep.subr.mxu0 0.0
        %967 = vmatpush1.msra.mxu0 %v918
        %968 = vmatprep.subr.mxu0 0.0
        %969 = vmatpush1.msra.mxu0 %v919
        %970 = vmatprep.subr.mxu0 0.0
        %971 = vmatpush1.msra.mxu0 %v920
        %972 = vmatprep.subr.mxu0 0.0
        %973 = vmatpush1.msra.mxu0 %v921
        %974 = vmatprep.subr.mxu0 0.0
        %975 = vmatpush1.msra.mxu0 %v922
        %976 = vmatprep.subr.mxu0 0.0
        %977 = vmatpush1.msra.mxu0 %v923
        %978 = vmatprep.subr.mxu0 0.0
        %979 = vmatpush1.msra.mxu0 %v924
        %980 = vmatprep.subr.mxu0 0.0
        %981 = vmatpush1.msra.mxu0 %v925
        %982 = vmatprep.subr.mxu0 0.0
        %983 = vmatpush1.msra.mxu0 %v926
        %984 = vmatprep.subr.mxu0 0.0
        %985 = vmatpush1.msra.mxu0 %v927
        %986 = vmatprep.subr.mxu0 0.0
        %987 = vmatpush1.msra.mxu0 %v928
        %988 = vmatprep.subr.mxu0 0.0
        %989 = vmatpush1.msra.mxu0 %v929
        %990 = vmatprep.subr.mxu0 0.0
        %991 = vmatpush1.msra.mxu0 %v930
        %992 = vmatprep.subr.mxu0 0.0
        %993 = vmatpush1.msra.mxu0 %v931
        %994 = vmatprep.subr.mxu0 0.0
        %995 = vmatpush1.msra.mxu0 %v932
        %996 = vmatprep.subr.mxu0 0.0
        %997 = vmatpush1.msra.mxu0 %v933
        %998 = vmatprep.subr.mxu0 0.0
        %999 = vmatpush1.msra.mxu0 %v934
        %1000 = vmatprep.subr.mxu0 0.0
        %1001 = vmatpush1.msra.mxu0 %v935
        %1002 = vmatprep.subr.mxu0 0.0
        %1003 = vmatpush1.msra.mxu0 %v936
        %1004 = vmatprep.subr.mxu0 0.0
        %1005 = vmatpush1.msra.mxu0 %v937
        %1006 = vmatprep.subr.mxu0 0.0
        %1007 = vmatpush1.msra.mxu0 %v938
        %1008 = vmatprep.subr.mxu0 0.0
        %1009 = vmatpush1.msra.mxu0 %v939
        %1010 = vmatprep.subr.mxu0 0.0
        %1011 = vmatpush1.msra.mxu0 %v940
        %1012 = vmatprep.mubr.f32.mxu0 %v878
        %1013 = vmatmul.mubr.f32.gmra.mrb[0].mxu0 %v877
        %v1014 = vpop.f32.mrb[0].mxu0
        %v1015 = vadd.f32 %v946, %v1014
        %v1016 = vpop.f32.mrb[0].mxu0
        %1017 = vmatprep.mubr.f32.mxu0 %v880
        %1018 = vmatmul.mubr.f32.gmra.mrb[0].mxu0 %v879
        %v1019 = vpop.f32.mrb[0].mxu0
        %v1020 = vadd.f32 %v946, %v1019
        %v1021 = vpop.f32.mrb[0].mxu0
        %1022 = vmatprep.mubr.f32.mxu0 %v882
        %1023 = vmatmul.mubr.f32.gmra.mrb[0].mxu0 %v881
        %v1024 = vpop.f32.mrb[0].mxu0
        %v1025 = vadd.f32 %v946, %v1024
        %v1026 = vpop.f32.mrb[0].mxu0
        %1027 = vmatprep.mubr.f32.mxu0 %v884
        %1028 = vmatmul.mubr.f32.gmra.mrb[0].mxu0 %v883
        %v1029 = vpop.f32.mrb[0].mxu0
        %v1030 = vadd.f32 %v946, %v1029
        %v1031 = vpop.f32.mrb[0].mxu0
        %1032 = vmatprep.mubr.f32.mxu0 %v886
        %1033 = vmatmul.mubr.f32.gmra.mrb[0].mxu0 %v885
        %v1034 = vpop.f32.mrb[0].mxu0
        %v1035 = vadd.f32 %v946, %v1034
        %v1036 = vpop.f32.mrb[0].mxu0
        %1037 = vmatprep.mubr.f32.mxu0 %v888
        %1038 = vmatmul.mubr.f32.gmra.mrb[0].mxu0 %v887
        %v1039 = vpop.f32.mrb[0].mxu0
        %v1040 = vadd.f32 %v946, %v1039
        %v1041 = vpop.f32.mrb[0].mxu0
        %1042 = vmatprep.mubr.f32.mxu0 %v890
        %1043 = vmatmul.mubr.f32.gmra.mrb[0].mxu0 %v889
        %v1044 = vpop.f32.mrb[0].mxu0
        %v1045 = vadd.f32 %v946, %v1044
        %v1046 = vpop.f32.mrb[0].mxu0
        %1047 = vmatprep.mubr.f32.mxu0 %v892
        %1048 = vmatmul.mubr.f32.gmra.mrb[0].mxu0 %v891
        %v1049 = vpop.f32.mrb[0].mxu0
        %v1050 = vadd.f32 %v946, %v1049
        %v1051 = vpop.f32.mrb[0].mxu0
        %1052 = vmatprep.mubr.f32.mxu0 %v894
        %1053 = vmatmul.mubr.f32.gmra.mrb[0].mxu0 %v893
        %v1054 = vpop.f32.mrb[0].mxu0
        %v1055 = vadd.f32 %v946, %v1054
        %v1056 = vpop.f32.mrb[0].mxu0
        %1057 = vmatprep.mubr.f32.mxu0 %v896
        %1058 = vmatmul.mubr.f32.gmra.mrb[0].mxu0 %v895
        %v1059 = vpop.f32.mrb[0].mxu0
        %v1060 = vadd.f32 %v946, %v1059
        %v1061 = vpop.f32.mrb[0].mxu0
        %1062 = vmatprep.mubr.f32.mxu0 %v898
        %1063 = vmatmul.mubr.f32.gmra.mrb[0].mxu0 %v897
        %v1064 = vpop.f32.mrb[0].mxu0
        %v1065 = vadd.f32 %v946, %v1064
        %v1066 = vpop.f32.mrb[0].mxu0
        %1067 = vmatprep.mubr.f32.mxu0 %v900
        %1068 = vmatmul.mubr.f32.gmra.mrb[0].mxu0 %v899
        %v1069 = vpop.f32.mrb[0].mxu0
        %v1070 = vadd.f32 %v946, %v1069
        %v1071 = vpop.f32.mrb[0].mxu0
        %1072 = vmatprep.mubr.f32.mxu0 %v902
        %1073 = vmatmul.mubr.f32.gmra.mrb[0].mxu0 %v901
        %v1074 = vpop.f32.mrb[0].mxu0
        %v1075 = vadd.f32 %v946, %v1074
        %v1076 = vpop.f32.mrb[0].mxu0
        %1077 = vmatprep.mubr.f32.mxu0 %v904
        %1078 = vmatmul.mubr.f32.gmra.mrb[0].mxu0 %v903
        %v1079 = vpop.f32.mrb[0].mxu0
        %v1080 = vadd.f32 %v946, %v1079
        %v1081 = vpop.f32.mrb[0].mxu0
        %1082 = vmatprep.mubr.f32.mxu0 %v906
        %1083 = vmatmul.mubr.f32.gmra.mrb[0].mxu0 %v905
        %v1084 = vpop.f32.mrb[0].mxu0
        %v1085 = vadd.f32 %v946, %v1084
        %v1086 = vpop.f32.mrb[0].mxu0
        %1087 = vmatprep.mubr.f32.mxu0 %v908
        %1088 = vmatmul.mubr.f32.gmra.mrb[0].mxu0 %v907
        %v1089 = vpop.f32.mrb[0].mxu0
        %v1090 = vadd.f32 %v946, %v1089
        %v1091 = vpop.f32.mrb[0].mxu0
        %1092 = vdwg.mxu0
        %vm1093 = vcmp.gt.f32.partialorder %v1015, 0.0
        %vm1094 = vcmp.gt.f32.partialorder %v1020, 0.0
        %vm1095 = vcmp.gt.f32.partialorder %v1025, 0.0
        %vm1096 = vcmp.gt.f32.partialorder %v1030, 0.0
        %vm1097 = vcmp.gt.f32.partialorder %v1035, 0.0
        %vm1098 = vcmp.gt.f32.partialorder %v1040, 0.0
        %vm1099 = vcmp.gt.f32.partialorder %v1045, 0.0
        %vm1100 = vcmp.gt.f32.partialorder %v1050, 0.0
        %vm1101 = vcmp.gt.f32.partialorder %v1055, 0.0
        %vm1102 = vcmp.gt.f32.partialorder %v1060, 0.0
        %vm1103 = vcmp.gt.f32.partialorder %v1065, 0.0
        %vm1104 = vcmp.gt.f32.partialorder %v1070, 0.0
        %vm1105 = vcmp.gt.f32.partialorder %v1075, 0.0
        %vm1106 = vcmp.gt.f32.partialorder %v1080, 0.0
        %vm1107 = vcmp.gt.f32.partialorder %v1085, 0.0
        %vm1108 = vcmp.gt.f32.partialorder %v1090, 0.0
        %v1109 = vmul.f32 %v1015, 0.2
        %v1110 = vmul.f32 %v1020, 0.2
        %v1111 = vmul.f32 %v1025, 0.2
        %v1112 = vmul.f32 %v1030, 0.2
        %v1113 = vmul.f32 %v1035, 0.2
        %v1114 = vmul.f32 %v1040, 0.2
        %v1115 = vmul.f32 %v1045, 0.2
        %v1116 = vmul.f32 %v1050, 0.2
        %v1117 = vmul.f32 %v1055, 0.2
        %v1118 = vmul.f32 %v1060, 0.2
        %v1119 = vmul.f32 %v1065, 0.2
        %v1120 = vmul.f32 %v1070, 0.2
        %v1121 = vmul.f32 %v1075, 0.2
        %v1122 = vmul.f32 %v1080, 0.2
        %v1123 = vmul.f32 %v1085, 0.2
        %v1124 = vmul.f32 %v1090, 0.2
        %v1125 = vsel %vm1093, %v1015, %v1109
        %v1126 = vsel %vm1094, %v1020, %v1110
        %v1127 = vsel %vm1095, %v1025, %v1111
        %v1128 = vsel %vm1096, %v1030, %v1112
        %v1129 = vsel %vm1097, %v1035, %v1113
        %v1130 = vsel %vm1098, %v1040, %v1114
        %v1131 = vsel %vm1099, %v1045, %v1115
        %v1132 = vsel %vm1100, %v1050, %v1116
        %v1133 = vsel %vm1101, %v1055, %v1117
        %v1134 = vsel %vm1102, %v1060, %v1118
        %v1135 = vsel %vm1103, %v1065, %v1119
        %v1136 = vsel %vm1104, %v1070, %v1120
        %v1137 = vsel %vm1105, %v1075, %v1121
        %v1138 = vsel %vm1106, %v1080, %v1122
        %v1139 = vsel %vm1107, %v1085, %v1123
        %v1140 = vsel %vm1108, %v1090, %v1124
        %v1141 = vld [vmem:[%s7] sm:$0x1]
        %v1142 = vld [vmem:[#allocation2] sm:$0x1]
        %1144 = vset.pattern.permute.xlu0 0
        %1145 = vperm.xlu0 %1144, %v1142
        %v1146 = vpop.permute.xlu0 %1145
        %v1148 = vlaneseq
        %v1149 = vshrl.u32 %v1148, 7
        %v1150 = vsub.s32 0, %v1149
        %v1151 = vrot.slane %v1146, %v1150
        %1152 = vmatprep.subr.mxu0 0.0
        %1153 = vmatpush1.xpose.msra.mxu0 %v1125
        %1154 = vmatprep.subr.mxu0 0.0
        %1155 = vmatpush1.xpose.msra.mxu0 %v1126
        %1156 = vmatprep.subr.mxu0 0.0
        %1157 = vmatpush1.xpose.msra.mxu0 %v1127
        %1158 = vmatprep.subr.mxu0 0.0
        %1159 = vmatpush1.xpose.msra.mxu0 %v1128
        %1160 = vmatprep.subr.mxu0 0.0
        %1161 = vmatpush1.xpose.msra.mxu0 %v1129
        %1162 = vmatprep.subr.mxu0 0.0
        %1163 = vmatpush1.xpose.msra.mxu0 %v1130
        %1164 = vmatprep.subr.mxu0 0.0
        %1165 = vmatpush1.xpose.msra.mxu0 %v1131
        %1166 = vmatprep.subr.mxu0 0.0
        %1167 = vmatpush1.xpose.msra.mxu0 %v1132
        %1168 = vmatprep.subr.mxu0 0.0
        %1169 = vmatpush1.xpose.msra.mxu0 %v1133
        %1170 = vmatprep.subr.mxu0 0.0
        %1171 = vmatpush1.xpose.msra.mxu0 %v1134
        %1172 = vmatprep.subr.mxu0 0.0
        %1173 = vmatpush1.xpose.msra.mxu0 %v1135
        %1174 = vmatprep.subr.mxu0 0.0
        %1175 = vmatpush1.xpose.msra.mxu0 %v1136
        %1176 = vmatprep.subr.mxu0 0.0
        %1177 = vmatpush1.xpose.msra.mxu0 %v1137
        %1178 = vmatprep.subr.mxu0 0.0
        %1179 = vmatpush1.xpose.msra.mxu0 %v1138
        %1180 = vmatprep.subr.mxu0 0.0
        %1181 = vmatpush1.xpose.msra.mxu0 %v1139
        %1182 = vmatprep.subr.mxu0 0.0
        %1183 = vmatpush1.xpose.msra.mxu0 %v1140
        %1184 = vmatprep.subr.mxu0 0.0
        %1185 = vmatpush1.xpose.msra.mxu0 0.0
        %1186 = vmatprep.subr.mxu0 0.0
        %1187 = vmatpush1.xpose.msra.mxu0 0.0
        %1188 = vmatprep.subr.mxu0 0.0
        %1189 = vmatpush1.xpose.msra.mxu0 0.0
        %1190 = vmatprep.subr.mxu0 0.0
        %1191 = vmatpush1.xpose.msra.mxu0 0.0
        %1192 = vmatprep.subr.mxu0 0.0
        %1193 = vmatpush1.xpose.msra.mxu0 0.0
        %1194 = vmatprep.subr.mxu0 0.0
        %1195 = vmatpush1.xpose.msra.mxu0 0.0
        %1196 = vmatprep.subr.mxu0 0.0
        %1197 = vmatpush1.xpose.msra.mxu0 0.0
        %1198 = vmatprep.subr.mxu0 0.0
        %1199 = vmatpush1.xpose.msra.mxu0 0.0
        %1200 = vmatprep.subr.mxu0 0.0
        %1201 = vmatpush1.xpose.msra.mxu0 0.0
        %1202 = vmatprep.subr.mxu0 0.0
        %1203 = vmatpush1.xpose.msra.mxu0 0.0
        %1204 = vmatprep.subr.mxu0 0.0
        %1205 = vmatpush1.xpose.msra.mxu0 0.0
        %1206 = vmatprep.subr.mxu0 0.0
        %1207 = vmatpush1.xpose.msra.mxu0 0.0
        %1208 = vmatprep.subr.mxu0 0.0
        %1209 = vmatpush1.xpose.msra.mxu0 0.0
        %1210 = vmatprep.subr.mxu0 0.0
        %1211 = vmatpush1.xpose.msra.mxu0 0.0
        %1212 = vmatprep.subr.mxu0 0.0
        %1213 = vmatpush1.xpose.msra.mxu0 0.0
        %1214 = vmatprep.subr.mxu0 0.0
        %1215 = vmatpush1.xpose.msra.mxu0 0.0
        %1216 = vmatprep.mubr.f32.mxu0 0.0
        %1217 = vmatmul.mubr.f32.gmra.mrb[0].mxu0 %v1141
        %v1218 = vpop.f32.mrb[0].mxu0
        %v1219 = vadd.f32 %v1151, %v1218
        %v1220 = vpop.f32.mrb[0].mxu0
        %1221 = vdwg.mxu0
        %v1222 = vxor.u32 %v1219, 2147483648
        %v1223 = vmul.f32 %v1222, 1.442695
        %v1224 = vpow.pop %v1223
        %v1225 = vadd.f32 %v1224, 1.0
        %v1226 = vrcp.pop %v1225
        %v1227 = vmul.f32 1.0, %v1226
        %1228 = vst [vmem:[%s328] sm:$0x1] %v1227
        %v1229 = vld [vmem:[%s333 + $0x80] sm:$0xff]
        %v1230 = vld [vmem:[%s333 + $0x88] sm:$0xff]
        %v1231 = vld [vmem:[%s333 + $0x90] sm:$0xff]
        %v1232 = vld [vmem:[%s333 + $0x98] sm:$0xff]
        %v1233 = vld [vmem:[%s333 + $0xa0] sm:$0xff]
        %v1234 = vld [vmem:[%s333 + $0xa8] sm:$0xff]
        %v1235 = vld [vmem:[%s333 + $0xb0] sm:$0xff]
        %v1236 = vld [vmem:[%s333 + $0xb8] sm:$0xff]
        %v1237 = vld [vmem:[%s333 + $0xc0] sm:$0xff]
        %v1238 = vld [vmem:[%s333 + $0xc8] sm:$0xff]
        %v1239 = vld [vmem:[%s333 + $0xd0] sm:$0xff]
        %v1240 = vld [vmem:[%s333 + $0xd8] sm:$0xff]
        %v1241 = vld [vmem:[%s333 + $0xe0] sm:$0xff]
        %v1242 = vld [vmem:[%s333 + $0xe8] sm:$0xff]
        %v1243 = vld [vmem:[%s333 + $0xf0] sm:$0xff]
        %v1244 = vld [vmem:[%s333 + $0xf8] sm:$0xff]
        %v1245 = vld [vmem:[%s1] sm:$0xff]
        %v1246 = vld [vmem:[%s1 + $0x8] sm:$0xff]
        %v1247 = vld [vmem:[%s1 + $0x10] sm:$0xff]
        %v1248 = vld [vmem:[%s1 + $0x18] sm:$0xff]
        %v1249 = vld [vmem:[%s1 + $0x20] sm:$0xff]
        %v1250 = vld [vmem:[%s1 + $0x28] sm:$0xff]
        %v1251 = vld [vmem:[%s1 + $0x30] sm:$0xff]
        %v1252 = vld [vmem:[%s1 + $0x38] sm:$0xff]
        %v1253 = vld [vmem:[%s2] sm:$0x1]
        %v1255 = vlaneseq
        %v1256 = vshrl.u32 %v1255, 7
        %v1257 = vsub.s32 0, %v1256
        %v1258 = vrot.slane %v1253, %v1257
        %v1261 = vsel %vm366, %v1229, 0
        %v1264 = vsel %vm366, %v1230, 0
        %v1267 = vsel %vm366, %v1231, 0
        %v1270 = vsel %vm366, %v1232, 0
        %v1273 = vsel %vm366, %v1233, 0
        %v1276 = vsel %vm366, %v1234, 0
        %v1279 = vsel %vm366, %v1235, 0
        %v1282 = vsel %vm366, %v1236, 0
        %v1285 = vsel %vm366, %v1237, 0
        %v1288 = vsel %vm366, %v1238, 0
        %v1291 = vsel %vm366, %v1239, 0
        %v1294 = vsel %vm366, %v1240, 0
        %v1297 = vsel %vm366, %v1241, 0
        %v1300 = vsel %vm366, %v1242, 0
        %v1303 = vsel %vm366, %v1243, 0
        %v1306 = vsel %vm366, %v1244, 0
        %1308 = vmatprep.subr.mxu0 0.0
        %1309 = vmatpush1.msra.mxu0 %v1245
        %1310 = vmatprep.subr.mxu0 0.0
        %1311 = vmatpush1.msra.mxu0 %v1246
        %1312 = vmatprep.subr.mxu0 0.0
        %1313 = vmatpush1.msra.mxu0 %v1247
        %1314 = vmatprep.subr.mxu0 0.0
        %1315 = vmatpush1.msra.mxu0 %v1248
        %1316 = vmatprep.subr.mxu0 0.0
        %1317 = vmatpush1.msra.mxu0 %v1249
        %1318 = vmatprep.subr.mxu0 0.0
        %1319 = vmatpush1.msra.mxu0 %v1250
        %1320 = vmatprep.subr.mxu0 0.0
        %1321 = vmatpush1.msra.mxu0 %v1251
        %1322 = vmatprep.subr.mxu0 0.0
        %1323 = vmatpush1.msra.mxu0 %v1252
        %1324 = vmatprep.subr.mxu0 0.0
        %1325 = vmatpush1.msra.mxu0 0.0
        %1326 = vmatprep.subr.mxu0 0.0
        %1327 = vmatpush1.msra.mxu0 0.0
        %1328 = vmatprep.subr.mxu0 0.0
        %1329 = vmatpush1.msra.mxu0 0.0
        %1330 = vmatprep.subr.mxu0 0.0
        %1331 = vmatpush1.msra.mxu0 0.0
        %1332 = vmatprep.subr.mxu0 0.0
        %1333 = vmatpush1.msra.mxu0 0.0
        %1334 = vmatprep.subr.mxu0 0.0
        %1335 = vmatpush1.msra.mxu0 0.0
        %1336 = vmatprep.subr.mxu0 0.0
        %1337 = vmatpush1.msra.mxu0 0.0
        %1338 = vmatprep.subr.mxu0 0.0
        %1339 = vmatpush1.msra.mxu0 0.0
        %1340 = vmatprep.subr.mxu0 0.0
        %1341 = vmatpush1.msra.mxu0 0.0
        %1342 = vmatprep.subr.mxu0 0.0
        %1343 = vmatpush1.msra.mxu0 0.0
        %1344 = vmatprep.subr.mxu0 0.0
        %1345 = vmatpush1.msra.mxu0 0.0
        %1346 = vmatprep.subr.mxu0 0.0
        %1347 = vmatpush1.msra.mxu0 0.0
        %1348 = vmatprep.subr.mxu0 0.0
        %1349 = vmatpush1.msra.mxu0 0.0
        %1350 = vmatprep.subr.mxu0 0.0
        %1351 = vmatpush1.msra.mxu0 0.0
        %1352 = vmatprep.subr.mxu0 0.0
        %1353 = vmatpush1.msra.mxu0 0.0
        %1354 = vmatprep.subr.mxu0 0.0
        %1355 = vmatpush1.msra.mxu0 0.0
        %1356 = vmatprep.subr.mxu0 0.0
        %1357 = vmatpush1.msra.mxu0 0.0
        %1358 = vmatprep.subr.mxu0 0.0
        %1359 = vmatpush1.msra.mxu0 0.0
        %1360 = vmatprep.subr.mxu0 0.0
        %1361 = vmatpush1.msra.mxu0 0.0
        %1362 = vmatprep.subr.mxu0 0.0
        %1363 = vmatpush1.msra.mxu0 0.0
        %1364 = vmatprep.subr.mxu0 0.0
        %1365 = vmatpush1.msra.mxu0 0.0
        %1366 = vmatprep.subr.mxu0 0.0
        %1367 = vmatpush1.msra.mxu0 0.0
        %1368 = vmatprep.subr.mxu0 0.0
        %1369 = vmatpush1.msra.mxu0 0.0
        %1370 = vmatprep.subr.mxu0 0.0
        %1371 = vmatpush1.msra.mxu0 0.0
        %1372 = vmatprep.mubr.f32.mxu0 0.0
        %1373 = vmatmul.mubr.f32.gmra.mrb[0].mxu0 %v1261
        %v1374 = vpop.f32.mrb[0].mxu0
        %v1375 = vadd.f32 %v1258, %v1374
        %v1376 = vpop.f32.mrb[0].mxu0
        %1377 = vmatprep.mubr.f32.mxu0 0.0
        %1378 = vmatmul.mubr.f32.gmra.mrb[0].mxu0 %v1264
        %v1379 = vpop.f32.mrb[0].mxu0
        %v1380 = vadd.f32 %v1258, %v1379
        %v1381 = vpop.f32.mrb[0].mxu0
        %1382 = vmatprep.mubr.f32.mxu0 0.0
        %1383 = vmatmul.mubr.f32.gmra.mrb[0].mxu0 %v1267
        %v1384 = vpop.f32.mrb[0].mxu0
        %v1385 = vadd.f32 %v1258, %v1384
        %v1386 = vpop.f32.mrb[0].mxu0
        %1387 = vmatprep.mubr.f32.mxu0 0.0
        %1388 = vmatmul.mubr.f32.gmra.mrb[0].mxu0 %v1270
        %v1389 = vpop.f32.mrb[0].mxu0
        %v1390 = vadd.f32 %v1258, %v1389
        %v1391 = vpop.f32.mrb[0].mxu0
        %1392 = vmatprep.mubr.f32.mxu0 0.0
        %1393 = vmatmul.mubr.f32.gmra.mrb[0].mxu0 %v1273
        %v1394 = vpop.f32.mrb[0].mxu0
        %v1395 = vadd.f32 %v1258, %v1394
        %v1396 = vpop.f32.mrb[0].mxu0
        %1397 = vmatprep.mubr.f32.mxu0 0.0
        %1398 = vmatmul.mubr.f32.gmra.mrb[0].mxu0 %v1276
        %v1399 = vpop.f32.mrb[0].mxu0
        %v1400 = vadd.f32 %v1258, %v1399
        %v1401 = vpop.f32.mrb[0].mxu0
        %1402 = vmatprep.mubr.f32.mxu0 0.0
        %1403 = vmatmul.mubr.f32.gmra.mrb[0].mxu0 %v1279
        %v1404 = vpop.f32.mrb[0].mxu0
        %v1405 = vadd.f32 %v1258, %v1404
        %v1406 = vpop.f32.mrb[0].mxu0
        %1407 = vmatprep.mubr.f32.mxu0 0.0
        %1408 = vmatmul.mubr.f32.gmra.mrb[0].mxu0 %v1282
        %v1409 = vpop.f32.mrb[0].mxu0
        %v1410 = vadd.f32 %v1258, %v1409
        %v1411 = vpop.f32.mrb[0].mxu0
        %1412 = vmatprep.mubr.f32.mxu0 0.0
        %1413 = vmatmul.mubr.f32.gmra.mrb[0].mxu0 %v1285
        %v1414 = vpop.f32.mrb[0].mxu0
        %v1415 = vadd.f32 %v1258, %v1414
        %v1416 = vpop.f32.mrb[0].mxu0
        %1417 = vmatprep.mubr.f32.mxu0 0.0
        %1418 = vmatmul.mubr.f32.gmra.mrb[0].mxu0 %v1288
        %v1419 = vpop.f32.mrb[0].mxu0
        %v1420 = vadd.f32 %v1258, %v1419
        %v1421 = vpop.f32.mrb[0].mxu0
        %1422 = vmatprep.mubr.f32.mxu0 0.0
        %1423 = vmatmul.mubr.f32.gmra.mrb[0].mxu0 %v1291
        %v1424 = vpop.f32.mrb[0].mxu0
        %v1425 = vadd.f32 %v1258, %v1424
        %v1426 = vpop.f32.mrb[0].mxu0
        %1427 = vmatprep.mubr.f32.mxu0 0.0
        %1428 = vmatmul.mubr.f32.gmra.mrb[0].mxu0 %v1294
        %v1429 = vpop.f32.mrb[0].mxu0
        %v1430 = vadd.f32 %v1258, %v1429
        %v1431 = vpop.f32.mrb[0].mxu0
        %1432 = vmatprep.mubr.f32.mxu0 0.0
        %1433 = vmatmul.mubr.f32.gmra.mrb[0].mxu0 %v1297
        %v1434 = vpop.f32.mrb[0].mxu0
        %v1435 = vadd.f32 %v1258, %v1434
        %v1436 = vpop.f32.mrb[0].mxu0
        %1437 = vmatprep.mubr.f32.mxu0 0.0
        %1438 = vmatmul.mubr.f32.gmra.mrb[0].mxu0 %v1300
        %v1439 = vpop.f32.mrb[0].mxu0
        %v1440 = vadd.f32 %v1258, %v1439
        %v1441 = vpop.f32.mrb[0].mxu0
        %1442 = vmatprep.mubr.f32.mxu0 0.0
        %1443 = vmatmul.mubr.f32.gmra.mrb[0].mxu0 %v1303
        %v1444 = vpop.f32.mrb[0].mxu0
        %v1445 = vadd.f32 %v1258, %v1444
        %v1446 = vpop.f32.mrb[0].mxu0
        %1447 = vmatprep.mubr.f32.mxu0 0.0
        %1448 = vmatmul.mubr.f32.gmra.mrb[0].mxu0 %v1306
        %v1449 = vpop.f32.mrb[0].mxu0
        %v1450 = vadd.f32 %v1258, %v1449
        %v1451 = vpop.f32.mrb[0].mxu0
        %1452 = vdwg.mxu0
        %vm1453 = vcmp.gt.f32.partialorder %v1375, 0.0
        %vm1454 = vcmp.gt.f32.partialorder %v1380, 0.0
        %vm1455 = vcmp.gt.f32.partialorder %v1385, 0.0
        %vm1456 = vcmp.gt.f32.partialorder %v1390, 0.0
        %vm1457 = vcmp.gt.f32.partialorder %v1395, 0.0
        %vm1458 = vcmp.gt.f32.partialorder %v1400, 0.0
        %vm1459 = vcmp.gt.f32.partialorder %v1405, 0.0
        %vm1460 = vcmp.gt.f32.partialorder %v1410, 0.0
        %vm1461 = vcmp.gt.f32.partialorder %v1415, 0.0
        %vm1462 = vcmp.gt.f32.partialorder %v1420, 0.0
        %vm1463 = vcmp.gt.f32.partialorder %v1425, 0.0
        %vm1464 = vcmp.gt.f32.partialorder %v1430, 0.0
        %vm1465 = vcmp.gt.f32.partialorder %v1435, 0.0
        %vm1466 = vcmp.gt.f32.partialorder %v1440, 0.0
        %vm1467 = vcmp.gt.f32.partialorder %v1445, 0.0
        %vm1468 = vcmp.gt.f32.partialorder %v1450, 0.0
        %v1469 = vmul.f32 %v1375, 0.2
        %v1470 = vmul.f32 %v1380, 0.2
        %v1471 = vmul.f32 %v1385, 0.2
        %v1472 = vmul.f32 %v1390, 0.2
        %v1473 = vmul.f32 %v1395, 0.2
        %v1474 = vmul.f32 %v1400, 0.2
        %v1475 = vmul.f32 %v1405, 0.2
        %v1476 = vmul.f32 %v1410, 0.2
        %v1477 = vmul.f32 %v1415, 0.2
        %v1478 = vmul.f32 %v1420, 0.2
        %v1479 = vmul.f32 %v1425, 0.2
        %v1480 = vmul.f32 %v1430, 0.2
        %v1481 = vmul.f32 %v1435, 0.2
        %v1482 = vmul.f32 %v1440, 0.2
        %v1483 = vmul.f32 %v1445, 0.2
        %v1484 = vmul.f32 %v1450, 0.2
        %v1485 = vsel %vm1453, %v1375, %v1469
        %v1486 = vsel %vm1454, %v1380, %v1470
        %v1487 = vsel %vm1455, %v1385, %v1471
        %v1488 = vsel %vm1456, %v1390, %v1472
        %v1489 = vsel %vm1457, %v1395, %v1473
        %v1490 = vsel %vm1458, %v1400, %v1474
        %v1491 = vsel %vm1459, %v1405, %v1475
        %v1492 = vsel %vm1460, %v1410, %v1476
        %v1493 = vsel %vm1461, %v1415, %v1477
        %v1494 = vsel %vm1462, %v1420, %v1478
        %v1495 = vsel %vm1463, %v1425, %v1479
        %v1496 = vsel %vm1464, %v1430, %v1480
        %v1497 = vsel %vm1465, %v1435, %v1481
        %v1498 = vsel %vm1466, %v1440, %v1482
        %v1499 = vsel %vm1467, %v1445, %v1483
        %v1500 = vsel %vm1468, %v1450, %v1484
        %v1501 = vld [vmem:[%s3] sm:$0xff]
        %v1502 = vld [vmem:[%s3 + $0x8] sm:$0xff]
        %v1503 = vld [vmem:[%s3 + $0x10] sm:$0xff]
        %v1504 = vld [vmem:[%s3 + $0x18] sm:$0xff]
        %v1505 = vld [vmem:[%s3 + $0x20] sm:$0xff]
        %v1506 = vld [vmem:[%s3 + $0x28] sm:$0xff]
        %v1507 = vld [vmem:[%s3 + $0x30] sm:$0xff]
        %v1508 = vld [vmem:[%s3 + $0x38] sm:$0xff]
        %v1509 = vld [vmem:[%s3 + $0x40] sm:$0xff]
        %v1510 = vld [vmem:[%s3 + $0x48] sm:$0xff]
        %v1511 = vld [vmem:[%s3 + $0x50] sm:$0xff]
        %v1512 = vld [vmem:[%s3 + $0x58] sm:$0xff]
        %v1513 = vld [vmem:[%s3 + $0x60] sm:$0xff]
        %v1514 = vld [vmem:[%s3 + $0x68] sm:$0xff]
        %v1515 = vld [vmem:[%s3 + $0x70] sm:$0xff]
        %v1516 = vld [vmem:[%s3 + $0x78] sm:$0xff]
        %v1517 = vld [vmem:[%s3 + $0x80] sm:$0xff]
        %v1518 = vld [vmem:[%s3 + $0x88] sm:$0xff]
        %v1519 = vld [vmem:[%s3 + $0x90] sm:$0xff]
        %v1520 = vld [vmem:[%s3 + $0x98] sm:$0xff]
        %v1521 = vld [vmem:[%s3 + $0xa0] sm:$0xff]
        %v1522 = vld [vmem:[%s3 + $0xa8] sm:$0xff]
        %v1523 = vld [vmem:[%s3 + $0xb0] sm:$0xff]
        %v1524 = vld [vmem:[%s3 + $0xb8] sm:$0xff]
        %v1525 = vld [vmem:[%s3 + $0xc0] sm:$0xff]
        %v1526 = vld [vmem:[%s3 + $0xc8] sm:$0xff]
        %v1527 = vld [vmem:[%s3 + $0xd0] sm:$0xff]
        %v1528 = vld [vmem:[%s3 + $0xd8] sm:$0xff]
        %v1529 = vld [vmem:[%s3 + $0xe0] sm:$0xff]
        %v1530 = vld [vmem:[%s3 + $0xe8] sm:$0xff]
        %v1531 = vld [vmem:[%s3 + $0xf0] sm:$0xff]
        %v1532 = vld [vmem:[%s3 + $0xf8] sm:$0xff]
        %v1533 = vld [vmem:[%s4] sm:$0x3]
        %v1535 = vlaneseq
        %v1536 = vshrl.u32 %v1535, 7
        %v1537 = vsub.s32 0, %v1536
        %v1538 = vrot.slane %v1533, %v1537
        %v1539 = vlaneseq
        %v1540 = vshrl.u32 %v1539, 7
        %v1541 = vsub.s32 1, %v1540
        %v1542 = vrot.slane %v1533, %v1541
        %1545 = vmatprep.subr.mxu0 %v1502
        %1546 = vmatpush1.msra.mxu0 %v1501
        %1547 = vmatprep.subr.mxu0 %v1504
        %1548 = vmatpush1.msra.mxu0 %v1503
        %1549 = vmatprep.subr.mxu0 %v1506
        %1550 = vmatpush1.msra.mxu0 %v1505
        %1551 = vmatprep.subr.mxu0 %v1508
        %1552 = vmatpush1.msra.mxu0 %v1507
        %1553 = vmatprep.subr.mxu0 %v1510
        %1554 = vmatpush1.msra.mxu0 %v1509
        %1555 = vmatprep.subr.mxu0 %v1512
        %1556 = vmatpush1.msra.mxu0 %v1511
        %1557 = vmatprep.subr.mxu0 %v1514
        %1558 = vmatpush1.msra.mxu0 %v1513
        %1559 = vmatprep.subr.mxu0 %v1516
        %1560 = vmatpush1.msra.mxu0 %v1515
        %1561 = vmatprep.subr.mxu0 %v1518
        %1562 = vmatpush1.msra.mxu0 %v1517
        %1563 = vmatprep.subr.mxu0 %v1520
        %1564 = vmatpush1.msra.mxu0 %v1519
        %1565 = vmatprep.subr.mxu0 %v1522
        %1566 = vmatpush1.msra.mxu0 %v1521
        %1567 = vmatprep.subr.mxu0 %v1524
        %1568 = vmatpush1.msra.mxu0 %v1523
        %1569 = vmatprep.subr.mxu0 %v1526
        %1570 = vmatpush1.msra.mxu0 %v1525
        %1571 = vmatprep.subr.mxu0 %v1528
        %1572 = vmatpush1.msra.mxu0 %v1527
        %1573 = vmatprep.subr.mxu0 %v1530
        %1574 = vmatpush1.msra.mxu0 %v1529
        %1575 = vmatprep.subr.mxu0 %v1532
        %1576 = vmatpush1.msra.mxu0 %v1531
        %1577 = vmatprep.subr.mxu0 0.0
        %1578 = vmatpush1.msra.mxu0 0.0
        %1579 = vmatprep.subr.mxu0 0.0
        %1580 = vmatpush1.msra.mxu0 0.0
        %1581 = vmatprep.subr.mxu0 0.0
        %1582 = vmatpush1.msra.mxu0 0.0
        %1583 = vmatprep.subr.mxu0 0.0
        %1584 = vmatpush1.msra.mxu0 0.0
        %1585 = vmatprep.subr.mxu0 0.0
        %1586 = vmatpush1.msra.mxu0 0.0
        %1587 = vmatprep.subr.mxu0 0.0
        %1588 = vmatpush1.msra.mxu0 0.0
        %1589 = vmatprep.subr.mxu0 0.0
        %1590 = vmatpush1.msra.mxu0 0.0
        %1591 = vmatprep.subr.mxu0 0.0
        %1592 = vmatpush1.msra.mxu0 0.0
        %1593 = vmatprep.subr.mxu0 0.0
        %1594 = vmatpush1.msra.mxu0 0.0
        %1595 = vmatprep.subr.mxu0 0.0
        %1596 = vmatpush1.msra.mxu0 0.0
        %1597 = vmatprep.subr.mxu0 0.0
        %1598 = vmatpush1.msra.mxu0 0.0
        %1599 = vmatprep.subr.mxu0 0.0
        %1600 = vmatpush1.msra.mxu0 0.0
        %1601 = vmatprep.subr.mxu0 0.0
        %1602 = vmatpush1.msra.mxu0 0.0
        %1603 = vmatprep.subr.mxu0 0.0
        %1604 = vmatpush1.msra.mxu0 0.0
        %1605 = vmatprep.subr.mxu0 0.0
        %1606 = vmatpush1.msra.mxu0 0.0
        %1607 = vmatprep.subr.mxu0 0.0
        %1608 = vmatpush1.msra.mxu0 0.0
        %1609 = vmatprep.mubr.f32.mxu0 0.0
        %1610 = vmatmul.mubr.f32.gmra.mrb[0].mxu0 %v1485
        %v1611 = vpop.f32.mrb[0].mxu0
        %v1612 = vadd.f32 %v1538, %v1611
        %v1613 = vpop.f32.mrb[0].mxu0
        %v1614 = vadd.f32 %v1542, %v1613
        %1615 = vmatprep.mubr.f32.mxu0 0.0
        %1616 = vmatmul.mubr.f32.gmra.mrb[0].mxu0 %v1486
        %v1617 = vpop.f32.mrb[0].mxu0
        %v1618 = vadd.f32 %v1538, %v1617
        %v1619 = vpop.f32.mrb[0].mxu0
        %v1620 = vadd.f32 %v1542, %v1619
        %1621 = vmatprep.mubr.f32.mxu0 0.0
        %1622 = vmatmul.mubr.f32.gmra.mrb[0].mxu0 %v1487
        %v1623 = vpop.f32.mrb[0].mxu0
        %v1624 = vadd.f32 %v1538, %v1623
        %v1625 = vpop.f32.mrb[0].mxu0
        %v1626 = vadd.f32 %v1542, %v1625
        %1627 = vmatprep.mubr.f32.mxu0 0.0
        %1628 = vmatmul.mubr.f32.gmra.mrb[0].mxu0 %v1488
        %v1629 = vpop.f32.mrb[0].mxu0
        %v1630 = vadd.f32 %v1538, %v1629
        %v1631 = vpop.f32.mrb[0].mxu0
        %v1632 = vadd.f32 %v1542, %v1631
        %1633 = vmatprep.mubr.f32.mxu0 0.0
        %1634 = vmatmul.mubr.f32.gmra.mrb[0].mxu0 %v1489
        %v1635 = vpop.f32.mrb[0].mxu0
        %v1636 = vadd.f32 %v1538, %v1635
        %v1637 = vpop.f32.mrb[0].mxu0
        %v1638 = vadd.f32 %v1542, %v1637
        %1639 = vmatprep.mubr.f32.mxu0 0.0
        %1640 = vmatmul.mubr.f32.gmra.mrb[0].mxu0 %v1490
        %v1641 = vpop.f32.mrb[0].mxu0
        %v1642 = vadd.f32 %v1538, %v1641
        %v1643 = vpop.f32.mrb[0].mxu0
        %v1644 = vadd.f32 %v1542, %v1643
        %1645 = vmatprep.mubr.f32.mxu0 0.0
        %1646 = vmatmul.mubr.f32.gmra.mrb[0].mxu0 %v1491
        %v1647 = vpop.f32.mrb[0].mxu0
        %v1648 = vadd.f32 %v1538, %v1647
        %v1649 = vpop.f32.mrb[0].mxu0
        %v1650 = vadd.f32 %v1542, %v1649
        %1651 = vmatprep.mubr.f32.mxu0 0.0
        %1652 = vmatmul.mubr.f32.gmra.mrb[0].mxu0 %v1492
        %v1653 = vpop.f32.mrb[0].mxu0
        %v1654 = vadd.f32 %v1538, %v1653
        %v1655 = vpop.f32.mrb[0].mxu0
        %v1656 = vadd.f32 %v1542, %v1655
        %1657 = vmatprep.mubr.f32.mxu0 0.0
        %1658 = vmatmul.mubr.f32.gmra.mrb[0].mxu0 %v1493
        %v1659 = vpop.f32.mrb[0].mxu0
        %v1660 = vadd.f32 %v1538, %v1659
        %v1661 = vpop.f32.mrb[0].mxu0
        %v1662 = vadd.f32 %v1542, %v1661
        %1663 = vmatprep.mubr.f32.mxu0 0.0
        %1664 = vmatmul.mubr.f32.gmra.mrb[0].mxu0 %v1494
        %v1665 = vpop.f32.mrb[0].mxu0
        %v1666 = vadd.f32 %v1538, %v1665
        %v1667 = vpop.f32.mrb[0].mxu0
        %v1668 = vadd.f32 %v1542, %v1667
        %1669 = vmatprep.mubr.f32.mxu0 0.0
        %1670 = vmatmul.mubr.f32.gmra.mrb[0].mxu0 %v1495
        %v1671 = vpop.f32.mrb[0].mxu0
        %v1672 = vadd.f32 %v1538, %v1671
        %v1673 = vpop.f32.mrb[0].mxu0
        %v1674 = vadd.f32 %v1542, %v1673
        %1675 = vmatprep.mubr.f32.mxu0 0.0
        %1676 = vmatmul.mubr.f32.gmra.mrb[0].mxu0 %v1496
        %v1677 = vpop.f32.mrb[0].mxu0
        %v1678 = vadd.f32 %v1538, %v1677
        %v1679 = vpop.f32.mrb[0].mxu0
        %v1680 = vadd.f32 %v1542, %v1679
        %1681 = vmatprep.mubr.f32.mxu0 0.0
        %1682 = vmatmul.mubr.f32.gmra.mrb[0].mxu0 %v1497
        %v1683 = vpop.f32.mrb[0].mxu0
        %v1684 = vadd.f32 %v1538, %v1683
        %v1685 = vpop.f32.mrb[0].mxu0
        %v1686 = vadd.f32 %v1542, %v1685
        %1687 = vmatprep.mubr.f32.mxu0 0.0
        %1688 = vmatmul.mubr.f32.gmra.mrb[0].mxu0 %v1498
        %v1689 = vpop.f32.mrb[0].mxu0
        %v1690 = vadd.f32 %v1538, %v1689
        %v1691 = vpop.f32.mrb[0].mxu0
        %v1692 = vadd.f32 %v1542, %v1691
        %1693 = vmatprep.mubr.f32.mxu0 0.0
        %1694 = vmatmul.mubr.f32.gmra.mrb[0].mxu0 %v1499
        %v1695 = vpop.f32.mrb[0].mxu0
        %v1696 = vadd.f32 %v1538, %v1695
        %v1697 = vpop.f32.mrb[0].mxu0
        %v1698 = vadd.f32 %v1542, %v1697
        %1699 = vmatprep.mubr.f32.mxu0 0.0
        %1700 = vmatmul.mubr.f32.gmra.mrb[0].mxu0 %v1500
        %v1701 = vpop.f32.mrb[0].mxu0
        %v1702 = vadd.f32 %v1538, %v1701
        %v1703 = vpop.f32.mrb[0].mxu0
        %v1704 = vadd.f32 %v1542, %v1703
        %1705 = vdwg.mxu0
        %vm1706 = vcmp.gt.f32.partialorder %v1612, 0.0
        %vm1707 = vcmp.gt.f32.partialorder %v1614, 0.0
        %vm1708 = vcmp.gt.f32.partialorder %v1618, 0.0
        %vm1709 = vcmp.gt.f32.partialorder %v1620, 0.0
        %vm1710 = vcmp.gt.f32.partialorder %v1624, 0.0
        %vm1711 = vcmp.gt.f32.partialorder %v1626, 0.0
        %vm1712 = vcmp.gt.f32.partialorder %v1630, 0.0
        %vm1713 = vcmp.gt.f32.partialorder %v1632, 0.0
        %vm1714 = vcmp.gt.f32.partialorder %v1636, 0.0
        %vm1715 = vcmp.gt.f32.partialorder %v1638, 0.0
        %vm1716 = vcmp.gt.f32.partialorder %v1642, 0.0
        %vm1717 = vcmp.gt.f32.partialorder %v1644, 0.0
        %vm1718 = vcmp.gt.f32.partialorder %v1648, 0.0
        %vm1719 = vcmp.gt.f32.partialorder %v1650, 0.0
        %vm1720 = vcmp.gt.f32.partialorder %v1654, 0.0
        %vm1721 = vcmp.gt.f32.partialorder %v1656, 0.0
        %vm1722 = vcmp.gt.f32.partialorder %v1660, 0.0
        %vm1723 = vcmp.gt.f32.partialorder %v1662, 0.0
        %vm1724 = vcmp.gt.f32.partialorder %v1666, 0.0
        %vm1725 = vcmp.gt.f32.partialorder %v1668, 0.0
        %vm1726 = vcmp.gt.f32.partialorder %v1672, 0.0
        %vm1727 = vcmp.gt.f32.partialorder %v1674, 0.0
        %vm1728 = vcmp.gt.f32.partialorder %v1678, 0.0
        %vm1729 = vcmp.gt.f32.partialorder %v1680, 0.0
        %vm1730 = vcmp.gt.f32.partialorder %v1684, 0.0
        %vm1731 = vcmp.gt.f32.partialorder %v1686, 0.0
        %vm1732 = vcmp.gt.f32.partialorder %v1690, 0.0
        %vm1733 = vcmp.gt.f32.partialorder %v1692, 0.0
        %vm1734 = vcmp.gt.f32.partialorder %v1696, 0.0
        %vm1735 = vcmp.gt.f32.partialorder %v1698, 0.0
        %vm1736 = vcmp.gt.f32.partialorder %v1702, 0.0
        %vm1737 = vcmp.gt.f32.partialorder %v1704, 0.0
        %v1738 = vmul.f32 %v1612, 0.2
        %v1739 = vmul.f32 %v1614, 0.2
        %v1740 = vmul.f32 %v1618, 0.2
        %v1741 = vmul.f32 %v1620, 0.2
        %v1742 = vmul.f32 %v1624, 0.2
        %v1743 = vmul.f32 %v1626, 0.2
        %v1744 = vmul.f32 %v1630, 0.2
        %v1745 = vmul.f32 %v1632, 0.2
        %v1746 = vmul.f32 %v1636, 0.2
        %v1747 = vmul.f32 %v1638, 0.2
        %v1748 = vmul.f32 %v1642, 0.2
        %v1749 = vmul.f32 %v1644, 0.2
        %v1750 = vmul.f32 %v1648, 0.2
        %v1751 = vmul.f32 %v1650, 0.2
        %v1752 = vmul.f32 %v1654, 0.2
        %v1753 = vmul.f32 %v1656, 0.2
        %v1754 = vmul.f32 %v1660, 0.2
        %v1755 = vmul.f32 %v1662, 0.2
        %v1756 = vmul.f32 %v1666, 0.2
        %v1757 = vmul.f32 %v1668, 0.2
        %v1758 = vmul.f32 %v1672, 0.2
        %v1759 = vmul.f32 %v1674, 0.2
        %v1760 = vmul.f32 %v1678, 0.2
        %v1761 = vmul.f32 %v1680, 0.2
        %v1762 = vmul.f32 %v1684, 0.2
        %v1763 = vmul.f32 %v1686, 0.2
        %v1764 = vmul.f32 %v1690, 0.2
        %v1765 = vmul.f32 %v1692, 0.2
        %v1766 = vmul.f32 %v1696, 0.2
        %v1767 = vmul.f32 %v1698, 0.2
        %v1768 = vmul.f32 %v1702, 0.2
        %v1769 = vmul.f32 %v1704, 0.2
        %v1770 = vsel %vm1706, %v1612, %v1738
        %v1771 = vsel %vm1707, %v1614, %v1739
        %v1772 = vsel %vm1708, %v1618, %v1740
        %v1773 = vsel %vm1709, %v1620, %v1741
        %v1774 = vsel %vm1710, %v1624, %v1742
        %v1775 = vsel %vm1711, %v1626, %v1743
        %v1776 = vsel %vm1712, %v1630, %v1744
        %v1777 = vsel %vm1713, %v1632, %v1745
        %v1778 = vsel %vm1714, %v1636, %v1746
        %v1779 = vsel %vm1715, %v1638, %v1747
        %v1780 = vsel %vm1716, %v1642, %v1748
        %v1781 = vsel %vm1717, %v1644, %v1749
        %v1782 = vsel %vm1718, %v1648, %v1750
        %v1783 = vsel %vm1719, %v1650, %v1751
        %v1784 = vsel %vm1720, %v1654, %v1752
        %v1785 = vsel %vm1721, %v1656, %v1753
        %v1786 = vsel %vm1722, %v1660, %v1754
        %v1787 = vsel %vm1723, %v1662, %v1755
        %v1788 = vsel %vm1724, %v1666, %v1756
        %v1789 = vsel %vm1725, %v1668, %v1757
        %v1790 = vsel %vm1726, %v1672, %v1758
        %v1791 = vsel %vm1727, %v1674, %v1759
        %v1792 = vsel %vm1728, %v1678, %v1760
        %v1793 = vsel %vm1729, %v1680, %v1761
        %v1794 = vsel %vm1730, %v1684, %v1762
        %v1795 = vsel %vm1731, %v1686, %v1763
        %v1796 = vsel %vm1732, %v1690, %v1764
        %v1797 = vsel %vm1733, %v1692, %v1765
        %v1798 = vsel %vm1734, %v1696, %v1766
        %v1799 = vsel %vm1735, %v1698, %v1767
        %v1800 = vsel %vm1736, %v1702, %v1768
        %v1801 = vsel %vm1737, %v1704, %v1769
        %v1802 = vld [vmem:[%s5] sm:$0xff]
        %v1803 = vld [vmem:[%s5 + $0x8] sm:$0xff]
        %v1804 = vld [vmem:[%s5 + $0x10] sm:$0xff]
        %v1805 = vld [vmem:[%s5 + $0x18] sm:$0xff]
        %v1806 = vld [vmem:[%s5 + $0x20] sm:$0xff]
        %v1807 = vld [vmem:[%s5 + $0x28] sm:$0xff]
        %v1808 = vld [vmem:[%s5 + $0x30] sm:$0xff]
        %v1809 = vld [vmem:[%s5 + $0x38] sm:$0xff]
        %v1810 = vld [vmem:[%s5 + $0x40] sm:$0xff]
        %v1811 = vld [vmem:[%s5 + $0x48] sm:$0xff]
        %v1812 = vld [vmem:[%s5 + $0x50] sm:$0xff]
        %v1813 = vld [vmem:[%s5 + $0x58] sm:$0xff]
        %v1814 = vld [vmem:[%s5 + $0x60] sm:$0xff]
        %v1815 = vld [vmem:[%s5 + $0x68] sm:$0xff]
        %v1816 = vld [vmem:[%s5 + $0x70] sm:$0xff]
        %v1817 = vld [vmem:[%s5 + $0x78] sm:$0xff]
        %v1818 = vld [vmem:[%s5 + $0x80] sm:$0xff]
        %v1819 = vld [vmem:[%s5 + $0x88] sm:$0xff]
        %v1820 = vld [vmem:[%s5 + $0x90] sm:$0xff]
        %v1821 = vld [vmem:[%s5 + $0x98] sm:$0xff]
        %v1822 = vld [vmem:[%s5 + $0xa0] sm:$0xff]
        %v1823 = vld [vmem:[%s5 + $0xa8] sm:$0xff]
        %v1824 = vld [vmem:[%s5 + $0xb0] sm:$0xff]
        %v1825 = vld [vmem:[%s5 + $0xb8] sm:$0xff]
        %v1826 = vld [vmem:[%s5 + $0xc0] sm:$0xff]
        %v1827 = vld [vmem:[%s5 + $0xc8] sm:$0xff]
        %v1828 = vld [vmem:[%s5 + $0xd0] sm:$0xff]
        %v1829 = vld [vmem:[%s5 + $0xd8] sm:$0xff]
        %v1830 = vld [vmem:[%s5 + $0xe0] sm:$0xff]
        %v1831 = vld [vmem:[%s5 + $0xe8] sm:$0xff]
        %v1832 = vld [vmem:[%s5 + $0xf0] sm:$0xff]
        %v1833 = vld [vmem:[%s5 + $0xf8] sm:$0xff]
        %v1834 = vld [vmem:[%s6] sm:$0x1]
        %v1836 = vlaneseq
        %v1837 = vshrl.u32 %v1836, 7
        %v1838 = vsub.s32 0, %v1837
        %v1839 = vrot.slane %v1834, %v1838
        %1841 = vmatprep.subr.mxu0 0.0
        %1842 = vmatpush1.msra.mxu0 %v1802
        %1843 = vmatprep.subr.mxu0 0.0
        %1844 = vmatpush1.msra.mxu0 %v1803
        %1845 = vmatprep.subr.mxu0 0.0
        %1846 = vmatpush1.msra.mxu0 %v1804
        %1847 = vmatprep.subr.mxu0 0.0
        %1848 = vmatpush1.msra.mxu0 %v1805
        %1849 = vmatprep.subr.mxu0 0.0
        %1850 = vmatpush1.msra.mxu0 %v1806
        %1851 = vmatprep.subr.mxu0 0.0
        %1852 = vmatpush1.msra.mxu0 %v1807
        %1853 = vmatprep.subr.mxu0 0.0
        %1854 = vmatpush1.msra.mxu0 %v1808
        %1855 = vmatprep.subr.mxu0 0.0
        %1856 = vmatpush1.msra.mxu0 %v1809
        %1857 = vmatprep.subr.mxu0 0.0
        %1858 = vmatpush1.msra.mxu0 %v1810
        %1859 = vmatprep.subr.mxu0 0.0
        %1860 = vmatpush1.msra.mxu0 %v1811
        %1861 = vmatprep.subr.mxu0 0.0
        %1862 = vmatpush1.msra.mxu0 %v1812
        %1863 = vmatprep.subr.mxu0 0.0
        %1864 = vmatpush1.msra.mxu0 %v1813
        %1865 = vmatprep.subr.mxu0 0.0
        %1866 = vmatpush1.msra.mxu0 %v1814
        %1867 = vmatprep.subr.mxu0 0.0
        %1868 = vmatpush1.msra.mxu0 %v1815
        %1869 = vmatprep.subr.mxu0 0.0
        %1870 = vmatpush1.msra.mxu0 %v1816
        %1871 = vmatprep.subr.mxu0 0.0
        %1872 = vmatpush1.msra.mxu0 %v1817
        %1873 = vmatprep.subr.mxu0 0.0
        %1874 = vmatpush1.msra.mxu0 %v1818
        %1875 = vmatprep.subr.mxu0 0.0
        %1876 = vmatpush1.msra.mxu0 %v1819
        %1877 = vmatprep.subr.mxu0 0.0
        %1878 = vmatpush1.msra.mxu0 %v1820
        %1879 = vmatprep.subr.mxu0 0.0
        %1880 = vmatpush1.msra.mxu0 %v1821
        %1881 = vmatprep.subr.mxu0 0.0
        %1882 = vmatpush1.msra.mxu0 %v1822
        %1883 = vmatprep.subr.mxu0 0.0
        %1884 = vmatpush1.msra.mxu0 %v1823
        %1885 = vmatprep.subr.mxu0 0.0
        %1886 = vmatpush1.msra.mxu0 %v1824
        %1887 = vmatprep.subr.mxu0 0.0
        %1888 = vmatpush1.msra.mxu0 %v1825
        %1889 = vmatprep.subr.mxu0 0.0
        %1890 = vmatpush1.msra.mxu0 %v1826
        %1891 = vmatprep.subr.mxu0 0.0
        %1892 = vmatpush1.msra.mxu0 %v1827
        %1893 = vmatprep.subr.mxu0 0.0
        %1894 = vmatpush1.msra.mxu0 %v1828
        %1895 = vmatprep.subr.mxu0 0.0
        %1896 = vmatpush1.msra.mxu0 %v1829
        %1897 = vmatprep.subr.mxu0 0.0
        %1898 = vmatpush1.msra.mxu0 %v1830
        %1899 = vmatprep.subr.mxu0 0.0
        %1900 = vmatpush1.msra.mxu0 %v1831
        %1901 = vmatprep.subr.mxu0 0.0
        %1902 = vmatpush1.msra.mxu0 %v1832
        %1903 = vmatprep.subr.mxu0 0.0
        %1904 = vmatpush1.msra.mxu0 %v1833
        %1905 = vmatprep.mubr.f32.mxu0 %v1771
        %1906 = vmatmul.mubr.f32.gmra.mrb[0].mxu0 %v1770
        %v1907 = vpop.f32.mrb[0].mxu0
        %v1908 = vadd.f32 %v1839, %v1907
        %v1909 = vpop.f32.mrb[0].mxu0
        %1910 = vmatprep.mubr.f32.mxu0 %v1773
        %1911 = vmatmul.mubr.f32.gmra.mrb[0].mxu0 %v1772
        %v1912 = vpop.f32.mrb[0].mxu0
        %v1913 = vadd.f32 %v1839, %v1912
        %v1914 = vpop.f32.mrb[0].mxu0
        %1915 = vmatprep.mubr.f32.mxu0 %v1775
        %1916 = vmatmul.mubr.f32.gmra.mrb[0].mxu0 %v1774
        %v1917 = vpop.f32.mrb[0].mxu0
        %v1918 = vadd.f32 %v1839, %v1917
        %v1919 = vpop.f32.mrb[0].mxu0
        %1920 = vmatprep.mubr.f32.mxu0 %v1777
        %1921 = vmatmul.mubr.f32.gmra.mrb[0].mxu0 %v1776
        %v1922 = vpop.f32.mrb[0].mxu0
        %v1923 = vadd.f32 %v1839, %v1922
        %v1924 = vpop.f32.mrb[0].mxu0
        %1925 = vmatprep.mubr.f32.mxu0 %v1779
        %1926 = vmatmul.mubr.f32.gmra.mrb[0].mxu0 %v1778
        %v1927 = vpop.f32.mrb[0].mxu0
        %v1928 = vadd.f32 %v1839, %v1927
        %v1929 = vpop.f32.mrb[0].mxu0
        %1930 = vmatprep.mubr.f32.mxu0 %v1781
        %1931 = vmatmul.mubr.f32.gmra.mrb[0].mxu0 %v1780
        %v1932 = vpop.f32.mrb[0].mxu0
        %v1933 = vadd.f32 %v1839, %v1932
        %v1934 = vpop.f32.mrb[0].mxu0
        %1935 = vmatprep.mubr.f32.mxu0 %v1783
        %1936 = vmatmul.mubr.f32.gmra.mrb[0].mxu0 %v1782
        %v1937 = vpop.f32.mrb[0].mxu0
        %v1938 = vadd.f32 %v1839, %v1937
        %v1939 = vpop.f32.mrb[0].mxu0
        %1940 = vmatprep.mubr.f32.mxu0 %v1785
        %1941 = vmatmul.mubr.f32.gmra.mrb[0].mxu0 %v1784
        %v1942 = vpop.f32.mrb[0].mxu0
        %v1943 = vadd.f32 %v1839, %v1942
        %v1944 = vpop.f32.mrb[0].mxu0
        %1945 = vmatprep.mubr.f32.mxu0 %v1787
        %1946 = vmatmul.mubr.f32.gmra.mrb[0].mxu0 %v1786
        %v1947 = vpop.f32.mrb[0].mxu0
        %v1948 = vadd.f32 %v1839, %v1947
        %v1949 = vpop.f32.mrb[0].mxu0
        %1950 = vmatprep.mubr.f32.mxu0 %v1789
        %1951 = vmatmul.mubr.f32.gmra.mrb[0].mxu0 %v1788
        %v1952 = vpop.f32.mrb[0].mxu0
        %v1953 = vadd.f32 %v1839, %v1952
        %v1954 = vpop.f32.mrb[0].mxu0
        %1955 = vmatprep.mubr.f32.mxu0 %v1791
        %1956 = vmatmul.mubr.f32.gmra.mrb[0].mxu0 %v1790
        %v1957 = vpop.f32.mrb[0].mxu0
        %v1958 = vadd.f32 %v1839, %v1957
        %v1959 = vpop.f32.mrb[0].mxu0
        %1960 = vmatprep.mubr.f32.mxu0 %v1793
        %1961 = vmatmul.mubr.f32.gmra.mrb[0].mxu0 %v1792
        %v1962 = vpop.f32.mrb[0].mxu0
        %v1963 = vadd.f32 %v1839, %v1962
        %v1964 = vpop.f32.mrb[0].mxu0
        %1965 = vmatprep.mubr.f32.mxu0 %v1795
        %1966 = vmatmul.mubr.f32.gmra.mrb[0].mxu0 %v1794
        %v1967 = vpop.f32.mrb[0].mxu0
        %v1968 = vadd.f32 %v1839, %v1967
        %v1969 = vpop.f32.mrb[0].mxu0
        %1970 = vmatprep.mubr.f32.mxu0 %v1797
        %1971 = vmatmul.mubr.f32.gmra.mrb[0].mxu0 %v1796
        %v1972 = vpop.f32.mrb[0].mxu0
        %v1973 = vadd.f32 %v1839, %v1972
        %v1974 = vpop.f32.mrb[0].mxu0
        %1975 = vmatprep.mubr.f32.mxu0 %v1799
        %1976 = vmatmul.mubr.f32.gmra.mrb[0].mxu0 %v1798
        %v1977 = vpop.f32.mrb[0].mxu0
        %v1978 = vadd.f32 %v1839, %v1977
        %v1979 = vpop.f32.mrb[0].mxu0
        %1980 = vmatprep.mubr.f32.mxu0 %v1801
        %1981 = vmatmul.mubr.f32.gmra.mrb[0].mxu0 %v1800
        %v1982 = vpop.f32.mrb[0].mxu0
        %v1983 = vadd.f32 %v1839, %v1982
        %v1984 = vpop.f32.mrb[0].mxu0
        %1985 = vdwg.mxu0
        %vm1986 = vcmp.gt.f32.partialorder %v1908, 0.0
        %vm1987 = vcmp.gt.f32.partialorder %v1913, 0.0
        %vm1988 = vcmp.gt.f32.partialorder %v1918, 0.0
        %vm1989 = vcmp.gt.f32.partialorder %v1923, 0.0
        %vm1990 = vcmp.gt.f32.partialorder %v1928, 0.0
        %vm1991 = vcmp.gt.f32.partialorder %v1933, 0.0
        %vm1992 = vcmp.gt.f32.partialorder %v1938, 0.0
        %vm1993 = vcmp.gt.f32.partialorder %v1943, 0.0
        %vm1994 = vcmp.gt.f32.partialorder %v1948, 0.0
        %vm1995 = vcmp.gt.f32.partialorder %v1953, 0.0
        %vm1996 = vcmp.gt.f32.partialorder %v1958, 0.0
        %vm1997 = vcmp.gt.f32.partialorder %v1963, 0.0
        %vm1998 = vcmp.gt.f32.partialorder %v1968, 0.0
        %vm1999 = vcmp.gt.f32.partialorder %v1973, 0.0
        %vm2000 = vcmp.gt.f32.partialorder %v1978, 0.0
        %vm2001 = vcmp.gt.f32.partialorder %v1983, 0.0
        %v2002 = vmul.f32 %v1908, 0.2
        %v2003 = vmul.f32 %v1913, 0.2
        %v2004 = vmul.f32 %v1918, 0.2
        %v2005 = vmul.f32 %v1923, 0.2
        %v2006 = vmul.f32 %v1928, 0.2
        %v2007 = vmul.f32 %v1933, 0.2
        %v2008 = vmul.f32 %v1938, 0.2
        %v2009 = vmul.f32 %v1943, 0.2
        %v2010 = vmul.f32 %v1948, 0.2
        %v2011 = vmul.f32 %v1953, 0.2
        %v2012 = vmul.f32 %v1958, 0.2
        %v2013 = vmul.f32 %v1963, 0.2
        %v2014 = vmul.f32 %v1968, 0.2
        %v2015 = vmul.f32 %v1973, 0.2
        %v2016 = vmul.f32 %v1978, 0.2
        %v2017 = vmul.f32 %v1983, 0.2
        %v2018 = vsel %vm1986, %v1908, %v2002
        %v2019 = vsel %vm1987, %v1913, %v2003
        %v2020 = vsel %vm1988, %v1918, %v2004
        %v2021 = vsel %vm1989, %v1923, %v2005
        %v2022 = vsel %vm1990, %v1928, %v2006
        %v2023 = vsel %vm1991, %v1933, %v2007
        %v2024 = vsel %vm1992, %v1938, %v2008
        %v2025 = vsel %vm1993, %v1943, %v2009
        %v2026 = vsel %vm1994, %v1948, %v2010
        %v2027 = vsel %vm1995, %v1953, %v2011
        %v2028 = vsel %vm1996, %v1958, %v2012
        %v2029 = vsel %vm1997, %v1963, %v2013
        %v2030 = vsel %vm1998, %v1968, %v2014
        %v2031 = vsel %vm1999, %v1973, %v2015
        %v2032 = vsel %vm2000, %v1978, %v2016
        %v2033 = vsel %vm2001, %v1983, %v2017
        %v2034 = vld [vmem:[%s7] sm:$0x1]
        %v2035 = vld [vmem:[#allocation2] sm:$0x1]
        %2037 = vset.pattern.permute.xlu0 0
        %2038 = vperm.xlu0 %2037, %v2035
        %v2039 = vpop.permute.xlu0 %2038
        %v2041 = vlaneseq
        %v2042 = vshrl.u32 %v2041, 7
        %v2043 = vsub.s32 0, %v2042
        %v2044 = vrot.slane %v2039, %v2043
        %2045 = vmatprep.subr.mxu0 0.0
        %2046 = vmatpush1.xpose.msra.mxu0 %v2018
        %2047 = vmatprep.subr.mxu0 0.0
        %2048 = vmatpush1.xpose.msra.mxu0 %v2019
        %2049 = vmatprep.subr.mxu0 0.0
        %2050 = vmatpush1.xpose.msra.mxu0 %v2020
        %2051 = vmatprep.subr.mxu0 0.0
        %2052 = vmatpush1.xpose.msra.mxu0 %v2021
        %2053 = vmatprep.subr.mxu0 0.0
        %2054 = vmatpush1.xpose.msra.mxu0 %v2022
        %2055 = vmatprep.subr.mxu0 0.0
        %2056 = vmatpush1.xpose.msra.mxu0 %v2023
        %2057 = vmatprep.subr.mxu0 0.0
        %2058 = vmatpush1.xpose.msra.mxu0 %v2024
        %2059 = vmatprep.subr.mxu0 0.0
        %2060 = vmatpush1.xpose.msra.mxu0 %v2025
        %2061 = vmatprep.subr.mxu0 0.0
        %2062 = vmatpush1.xpose.msra.mxu0 %v2026
        %2063 = vmatprep.subr.mxu0 0.0
        %2064 = vmatpush1.xpose.msra.mxu0 %v2027
        %2065 = vmatprep.subr.mxu0 0.0
        %2066 = vmatpush1.xpose.msra.mxu0 %v2028
        %2067 = vmatprep.subr.mxu0 0.0
        %2068 = vmatpush1.xpose.msra.mxu0 %v2029
        %2069 = vmatprep.subr.mxu0 0.0
        %2070 = vmatpush1.xpose.msra.mxu0 %v2030
        %2071 = vmatprep.subr.mxu0 0.0
        %2072 = vmatpush1.xpose.msra.mxu0 %v2031
        %2073 = vmatprep.subr.mxu0 0.0
        %2074 = vmatpush1.xpose.msra.mxu0 %v2032
        %2075 = vmatprep.subr.mxu0 0.0
        %2076 = vmatpush1.xpose.msra.mxu0 %v2033
        %2077 = vmatprep.subr.mxu0 0.0
        %2078 = vmatpush1.xpose.msra.mxu0 0.0
        %2079 = vmatprep.subr.mxu0 0.0
        %2080 = vmatpush1.xpose.msra.mxu0 0.0
        %2081 = vmatprep.subr.mxu0 0.0
        %2082 = vmatpush1.xpose.msra.mxu0 0.0
        %2083 = vmatprep.subr.mxu0 0.0
        %2084 = vmatpush1.xpose.msra.mxu0 0.0
        %2085 = vmatprep.subr.mxu0 0.0
        %2086 = vmatpush1.xpose.msra.mxu0 0.0
        %2087 = vmatprep.subr.mxu0 0.0
        %2088 = vmatpush1.xpose.msra.mxu0 0.0
        %2089 = vmatprep.subr.mxu0 0.0
        %2090 = vmatpush1.xpose.msra.mxu0 0.0
        %2091 = vmatprep.subr.mxu0 0.0
        %2092 = vmatpush1.xpose.msra.mxu0 0.0
        %2093 = vmatprep.subr.mxu0 0.0
        %2094 = vmatpush1.xpose.msra.mxu0 0.0
        %2095 = vmatprep.subr.mxu0 0.0
        %2096 = vmatpush1.xpose.msra.mxu0 0.0
        %2097 = vmatprep.subr.mxu0 0.0
        %2098 = vmatpush1.xpose.msra.mxu0 0.0
        %2099 = vmatprep.subr.mxu0 0.0
        %2100 = vmatpush1.xpose.msra.mxu0 0.0
        %2101 = vmatprep.subr.mxu0 0.0
        %2102 = vmatpush1.xpose.msra.mxu0 0.0
        %2103 = vmatprep.subr.mxu0 0.0
        %2104 = vmatpush1.xpose.msra.mxu0 0.0
        %2105 = vmatprep.subr.mxu0 0.0
        %2106 = vmatpush1.xpose.msra.mxu0 0.0
        %2107 = vmatprep.subr.mxu0 0.0
        %2108 = vmatpush1.xpose.msra.mxu0 0.0
        %2109 = vmatprep.mubr.f32.mxu0 0.0
        %2110 = vmatmul.mubr.f32.gmra.mrb[0].mxu0 %v2034
        %v2111 = vpop.f32.mrb[0].mxu0
        %v2112 = vadd.f32 %v2044, %v2111
        %v2113 = vpop.f32.mrb[0].mxu0
        %2114 = vdwg.mxu0
        %v2115 = vxor.u32 %v2112, 2147483648
        %v2116 = vmul.f32 %v2115, 1.442695
        %v2117 = vpow.pop %v2116
        %v2118 = vadd.f32 %v2117, 1.0
        %v2119 = vrcp.pop %v2118
        %v2120 = vmul.f32 1.0, %v2119
        %2121 = vst [vmem:[%s328 + $0x1] sm:$0x1] %v2120
        %s2122 = sand.u32 %s227, 1
        %s2123 = scalar_lea.sflag [#allocation4], %s2122
        %s2124 = sand.u32 %s227, 1
        %s2125 = smul.addr %s2124, 2
        %s2126 = scalar_lea.vmem [#allocation3], %s2125
        // Predicated region
        $region57: #{tpu_custom_call.1} parent=55 // pred_check
          %p2127 = pneg %p237
        $region58: #{tpu_custom_call.1} parent=55 // pred_check_branch
          %2129 = sbr.rel (%p2127) target = $region60
        $region59: #{tpu_custom_call.1} parent=55 // pred_region
          %s2131 = ssub.s32 32, 32
          %2132 = vsyncadd %s2123, %s2131
          %s2133 = smul.addr %s25, 32
          %s2134 = scalar_lea.hbm %s9, %s2133
          %s2136 = sshll.u32 %s2126, 4
          %s2137 = int_to_ptr.vmem [resolvable:$true] %s2136
          %2139 = dma.vmem_to_hbm [thread:$0]  %s2137, 32, %s2134, %s2123
        $region60: #{tpu_custom_call.1} parent=55 // pred_fallthru
          _
      $region56: #{tpu_custom_call.1} parent=5 // pred_fallthru
        _
      %p2140 = scmp.le.s32.totalorder 2, %s20
      // Predicated region
      $region61: #{tpu_custom_call.1} parent=5 // pred_check
        %p2141 = pneg %p2140
      $region62: #{tpu_custom_call.1} parent=5 // pred_check_branch
        %2143 = sbr.rel (%p2141) target = $region64
      $region63: #{tpu_custom_call.1} parent=5 // pred_region
        %s2144 = ssub.s32 %s20, 2
        // Predicated region
        $region65: #{tpu_custom_call.1} parent=63 // pred_check
          %p2145 = pneg %p243
        $region66: #{tpu_custom_call.1} parent=63 // pred_check_branch
          %2147 = sbr.rel (%p2145) target = $region68
        $region67: #{tpu_custom_call.1} parent=63 // pred_region
          %s2148 = sand.u32 %s228, 1
          %s2149 = scalar_lea.sflag [#allocation4], %s2148
          %s2150 = sand.u32 %s228, 1
          %s2151 = smul.addr %s2150, 2
          %s2152 = scalar_lea.vmem [#allocation3], %s2151
          %2153 = dma.done %s2149, 32
        $region68: #{tpu_custom_call.1} parent=63 // pred_fallthru
          _
      $region64: #{tpu_custom_call.1} parent=5 // pred_fallthru
        _
    $region6: #{tpu_custom_call.1} parent=1 // loop_footer
      %s24 = sadd.s32 1, %s20
    $region7: #{tpu_custom_call.1} parent=1 // loop_footer_branch
      %19 = sbr.rel target = $region3
    $region8: #{tpu_custom_call.1} parent=1 // loop_exit
      _
    %2154 = vsyncpa [#allocation4], 1
    %s2155 = scalar_lea.sflag [#allocation4], 1
    %2156 = vsyncpa %s2155, 1

</llo_original>
